<compile_context>
chip_gen: v5e
topology: v5e:2x2
jax: 0.10.0
libtpu: 0.0.40
codegen_flags: <defaults>
</compile_context>

<pallas_src>
import functools
import math

import jax
import jax.numpy as jnp
from jax import lax
from jax.experimental import pallas as pl
from jax.experimental.pallas import tpu as pltpu

_MASK_VALUE = -1e9
_KV_TILE = 256          # KV-cache capacity is padded to a multiple of this


def _round_up(x, m):
    return ((x + m - 1) // m) * m


def _pick_tile(dim, candidates):
    """Largest candidate that divides `dim`, else full extent (always legal)."""
    for c in candidates:
        if dim >= c and dim % c == 0:
            return c
    return dim


def _largest_divisor_leq(n, cap):
    for c in range(min(n, cap), 0, -1):
        if n % c == 0:
            return c
    return 1


@functools.lru_cache(maxsize=None)
def _vmem_limit_bytes():
    """Per-generation VMEM budget: physical capacity minus ~15% headroom.

    v7x (64 MiB physical) -> ~54 MiB, v5e/v6e (128 MiB) -> ~108 MiB.
    """
    try:
        cap = int(pltpu.get_tpu_info().vmem_capacity_bytes)
        return max(32 * 1024 * 1024, int(cap * 0.85))
    except Exception:
        return 48 * 1024 * 1024       # safe on every generation


# ----------------------------- tiled linear ---------------------------------

def _linear_kernel(x_ref, w_ref, b_ref, o_ref, acc_ref):
    # x: (tm, tk), w: (tk, tn) pre-transposed, b: (1, tn); y = x @ w + b.
    @pl.when(pl.program_id(2) == 0)
    def _init():
        acc_ref[...] = jnp.zeros_like(acc_ref)

    acc_ref[...] += jnp.dot(x_ref[...], w_ref[...],
                            preferred_element_type=jnp.float32)

    @pl.when(pl.program_id(2) == pl.num_programs(2) - 1)
    def _fin():
        o_ref[...] = (acc_ref[...] + b_ref[...]).astype(o_ref.dtype)


def _linear(x, w_t, b, *, out_dtype):
    """y = x @ w_t + b; w_t already laid out (K, N), b shaped (1, N) f32."""
    if x.dtype != w_t.dtype:
        x = x.astype(w_t.dtype)       # activations only; weights pre-cast once
    m, k = x.shape
    n = w_t.shape[1]
    tm = _pick_tile(m, (512, 256, 128))
    tn = _pick_tile(n, (1024, 512, 256, 128))
    tk = _pick_tile(k, (512, 256, 128))
    grid = (m // tm, n // tn, k // tk)
    return pl.pallas_call(
        _linear_kernel,
        out_shape=jax.ShapeDtypeStruct((m, n), out_dtype),
        grid_spec=pltpu.PrefetchScalarGridSpec(
            num_scalar_prefetch=0,
            grid=grid,
            in_specs=[
                pl.BlockSpec((tm, tk), lambda i, j, kk: (i, kk)),
                pl.BlockSpec((tk, tn), lambda i, j, kk: (kk, j)),
                pl.BlockSpec((1, tn), lambda i, j, kk: (0, j)),
            ],
            out_specs=pl.BlockSpec((tm, tn), lambda i, j, kk: (i, j)),
            scratch_shapes=[pltpu.VMEM((tm, tn), jnp.float32)],
        ),
        compiler_params=pltpu.CompilerParams(
            dimension_semantics=("parallel", "parallel", "arbitrary"),
            vmem_limit_bytes=_vmem_limit_bytes(),
        ),
    )(x, w_t, b)


# --------------------------- flash attention ---------------------------------

def _attn_init(m_scr, l_scr, acc_scr):
    m_scr[...] = jnp.full_like(m_scr, -jnp.inf)
    l_scr[...] = jnp.zeros_like(l_scr)
    acc_scr[...] = jnp.zeros_like(acc_scr)


def _attn_step(q_ref, k_ref, v_ref, bias, m_scr, l_scr, acc_scr):
    q = q_ref[...]                              # (Hb, Sq, D); 1/sqrt(D) folded in
    k = k_ref[...]                              # (Hb, Tt, D)
    v = v_ref[...]
    s = jnp.einsum("hqd,hkd->hqk", q, k, preferred_element_type=jnp.float32)
    if bias is not None:                        # static (trace-time) branch
        s = s + bias[None, :, :]
    m_prev = m_scr[...]
    m_new = jnp.maximum(m_prev, jnp.max(s, axis=-1, keepdims=True))
    alpha = jnp.exp(m_prev - m_new)
    p = jnp.exp(s - m_new)
    l_scr[...] = alpha * l_scr[...] + jnp.sum(p, axis=-1, keepdims=True)
    acc_scr[...] = alpha * acc_scr[...] + jnp.einsum(
        "hqk,hkd->hqd", p.astype(v.dtype), v, preferred_element_type=jnp.float32)
    m_scr[...] = m_new


def _attn_finalize(o_ref, l_scr, acc_scr):
    o_ref[...] = (acc_scr[...] *
                  pl.reciprocal(l_scr[...], approx=True)).astype(o_ref.dtype)


def _attn_kernel_causal(q_ref, k_ref, v_ref, o_ref, m_scr, l_scr, acc_scr,
                        *, sq, kv_tile, offset, total_len):
    qi = pl.program_id(1)
    t = pl.program_id(2)

    @pl.when(t == 0)
    def _init():
        _attn_init(m_scr, l_scr, acc_scr)

    q0 = qi * sq                      # first query row handled by this q block
    c0 = t * kv_tile                  # first key column of this KV tile
    # Tile classification (scalars): skip fully-masked tiles entirely, skip the
    # iota/where/add bias work for fully-visible interior tiles.
    fully_masked = jnp.logical_or(c0 > q0 + (sq - 1) + offset, c0 >= total_len)
    fully_visible = jnp.logical_and(c0 + kv_tile - 1 <= q0 + offset,
                                    c0 + kv_tile <= total_len)

    @pl.when(jnp.logical_and(jnp.logical_not(fully_masked), fully_visible))
    def _interior():
        _attn_step(q_ref, k_ref, v_ref, None, m_scr, l_scr, acc_scr)

    @pl.when(jnp.logical_and(jnp.logical_not(fully_masked),
                             jnp.logical_not(fully_visible)))
    def _edge():
        rows = q0 + lax.broadcasted_iota(jnp.int32, (sq, kv_tile), 0)
        cols = c0 + lax.broadcasted_iota(jnp.int32, (sq, kv_tile), 1)
        visible = jnp.logical_and(cols <= rows + offset, cols < total_len)
        bias = jnp.where(visible, 0.0, _MASK_VALUE).astype(jnp.float32)
        _attn_step(q_ref, k_ref, v_ref, bias, m_scr, l_scr, acc_scr)

    @pl.when(t == pl.num_programs(2) - 1)
    def _fin():
        _attn_finalize(o_ref, l_scr, acc_scr)


def _attn_kernel_mask(q_ref, k_ref, v_ref, mask_ref, o_ref, m_scr, l_scr,
                      acc_scr):
    t = pl.program_id(2)

    @pl.when(t == 0)
    def _init():
        _attn_init(m_scr, l_scr, acc_scr)

    _attn_step(q_ref, k_ref, v_ref, mask_ref[...], m_scr, l_scr, acc_scr)

    @pl.when(t == pl.num_programs(2) - 1)
    def _fin():
        _attn_finalize(o_ref, l_scr, acc_scr)


def _flash_attention(qh, kh, vh, attention_mask, *, total_seq_len,
                     causal_offset):
    # qh: (H, S, D), kh/vh: (H, T_cap, D) fixed-capacity caches,
    # attention_mask: (S, total_seq_len) additive or None.
    H, S, D = qh.shape
    cap = kh.shape[1]
    hb = _largest_divisor_leq(H, 8)                    # heads per grid step
    kv_tile = min(_KV_TILE, cap)
    assert cap % kv_tile == 0, "cache capacity must be a multiple of the KV tile"
    sq = _pick_tile(S, (512, 256, 128))                # query-tile rows
    n_kv = (total_seq_len + kv_tile - 1) // kv_tile    # only the live prefix
    grid = (H // hb, S // sq, n_kv)

    q_spec = pl.BlockSpec((hb, sq, D), lambda h, qi, t: (h, qi, 0))
    out_spec = pl.BlockSpec((hb, sq, D), lambda h, qi, t: (h, qi, 0))
    scratch = [pltpu.VMEM((hb, sq, 1), jnp.float32),   # running max m
               pltpu.VMEM((hb, sq, 1), jnp.float32),   # running sum l
               pltpu.VMEM((hb, sq, D), jnp.float32)]   # output accumulator

    if attention_mask is None:
        last_valid_blk = (total_seq_len - 1) // kv_tile

        def kv_map(h, qi, t):
            # Clamp to the last KV tile holding any visible key for this q
            # block: fully-masked steps re-use the already-resident block, so
            # no HBM traffic (and no compute, see pl.when) is spent on them.
            last_needed = (qi * sq + (sq - 1) + causal_offset) // kv_tile
            return (h, jnp.minimum(t, jnp.minimum(last_needed, last_valid_blk)), 0)

        kv_spec = pl.BlockSpec((hb, kv_tile, D), kv_map)
        kernel = functools.partial(_attn_kernel_causal, sq=sq, kv_tile=kv_tile,
                                   offset=causal_offset, total_len=total_seq_len)
        in_specs = [q_spec, kv_spec, kv_spec]
        args = (qh, kh, vh)
    else:
        # Explicit additive mask (module signature).  Padded key columns get
        # _MASK_VALUE.  Prefer the in-kernel causal path: it streams no (S, T)
        # mask from HBM (this one is re-read once per head block).
        assert attention_mask.shape == (S, total_seq_len)
        am = attention_mask.astype(jnp.float32)
        pad_cols = n_kv * kv_tile - am.shape[1]
        if pad_cols > 0:
            am = jnp.pad(am, ((0, 0), (0, pad_cols)),
                         constant_values=_MASK_VALUE)
        kv_spec = pl.BlockSpec((hb, kv_tile, D), lambda h, qi, t: (h, t, 0))
        mask_spec = pl.BlockSpec((sq, kv_tile), lambda h, qi, t: (qi, t))
        kernel = _attn_kernel_mask
        in_specs = [q_spec, kv_spec, kv_spec, mask_spec]
        args = (qh, kh, vh, am)

    return pl.pallas_call(
        kernel,
        out_shape=jax.ShapeDtypeStruct((H, S, D), qh.dtype),
        grid_spec=pltpu.PrefetchScalarGridSpec(
            num_scalar_prefetch=0,
            grid=grid,
            in_specs=in_specs,
            out_specs=out_spec,
            scratch_shapes=scratch,
        ),
        compiler_params=pltpu.CompilerParams(
            dimension_semantics=("parallel", "parallel", "arbitrary"),
            vmem_limit_bytes=_vmem_limit_bytes(),
        ),
    )(*args)


# ------------------------------ RoPE (glue) ----------------------------------

def _rope(x, offset, base=10000.0):
    """Standard Llama rotary embedding on (S, H, D) (tiny tensors, XLA-fused)."""
    S, _, D = x.shape
    half = D // 2
    inv_freq = 1.0 / (base ** (jnp.arange(0, half, dtype=jnp.float32) / half))
    pos = jnp.arange(S, dtype=jnp.float32) + float(offset)
    ang = pos[:, None] * inv_freq[None, :]                      # (S, half)
    cos = jnp.concatenate([jnp.cos(ang), jnp.cos(ang)], -1)[:, None, :]
    sin = jnp.concatenate([jnp.sin(ang), jnp.sin(ang)], -1)[:, None, :]
    rot = jnp.concatenate([-x[..., half:], x[..., :half]], axis=-1)
    xf = x.astype(jnp.float32)
    return (xf * cos + rot.astype(jnp.float32) * sin).astype(x.dtype)


# ---------------------------- params / cache ----------------------------------

def prepare_params(params, dtype=None):
    """Fuse q/k/v projections, pre-transpose to (K, N), cast weights ONCE.

    Pass dtype=jnp.bfloat16 at real Llama sizes: halves weight streaming and
    feeds the MXU at native width.  Biases stay f32 (added into the f32
    accumulator).
    """
    w_qkv_t = jnp.concatenate(
        [params["wq"], params["wk"], params["wv"]], axis=0).T   # (hidden, 3*hidden)
    b_qkv = jnp.concatenate([params["bq"], params["bk"], params["bv"]], axis=0)
    wo_t = params["wo"].T                                       # (hidden, hidden)
    if dtype is not None:
        w_qkv_t = w_qkv_t.astype(dtype)
        wo_t = wo_t.astype(dtype)
    return {
        "w_qkv_t": w_qkv_t,
        "b_qkv": b_qkv.reshape(1, -1).astype(jnp.float32),
        "wo_t": wo_t,
        "bo": params["bo"].reshape(1, -1).astype(jnp.float32),
    }


def init_kv_cache(num_kv_heads, max_sequence_length, head_dim,
                  dtype=jnp.float32):
    """Fixed-capacity, head-major (H, T_cap, D) caches.

    Capacity is padded to a multiple of the KV tile so the attention grid
    never falls back to a full-extent KV block.
    """
    cap = _round_up(max_sequence_length, _KV_TILE)
    return (jnp.zeros((num_kv_heads, cap, head_dim), dtype),
            jnp.zeros((num_kv_heads, cap, head_dim), dtype))


# ---------------------------- forward wrapper --------------------------------

def llama_attention_forward(prepared, hidden_states, attention_mask,
                            k_cache, v_cache, *, total_seq_len,
                            num_heads, num_kv_heads):
    """One LlamaAttention forward.

    Caches are fixed-capacity head-major (H, T_cap, D); the new S rows are
    written in place at [total_seq_len - S, total_seq_len) and only the first
    total_seq_len rows are attended to, reproducing the module's
    cat(cache, new)[-total_seq_len:] semantics for autoregressive use without
    rewriting the whole cache through HBM.  Donate k_cache/v_cache
    (jax.jit(..., donate_argnums=...)) in real serving so the window update is
    done in place by XLA.
    """
    B, S, hidden = hidden_states.shape
    assert B == 1, "module semantics (k.squeeze(0)) imply batch=1"
    assert num_heads == num_kv_heads, "reference .view() implies equal head counts"
    assert total_seq_len >= S, "total_seq_len must cover the new chunk"
    H = num_heads
    D = hidden // num_heads
    cap = k_cache.shape[1]
    assert total_seq_len <= cap, "cache capacity too small for total_seq_len"
    offset = total_seq_len - S
    dtype = hidden_states.dtype
    scale = 1.0 / math.sqrt(D)

    # ---- fused QKV projection: one wide tiled Pallas matmul ----
    x2 = hidden_states.reshape(B * S, hidden)
    qkv = _linear(x2, prepared["w_qkv_t"], prepared["b_qkv"], out_dtype=dtype)
    q = qkv[:, :hidden].reshape(S, H, D)
    k = qkv[:, hidden:2 * hidden].reshape(S, H, D)
    v = qkv[:, 2 * hidden:].reshape(S, H, D)

    # ---- RoPE on the new S-row chunk; fold 1/sqrt(D) into q ----
    # TODO(synk): fuse RoPE + scaling + (S,H,D)->(H,S,D) relayout into the QKV
    # matmul epilogue (pltpu.roll on the XLU) to drop these XLA glue passes.
    q = _rope(q, offset) * jnp.asarray(scale, dtype)
    k = _rope(k, offset)

    qh = jnp.transpose(q, (1, 0, 2))            # (H, S, D)
    kh_new = jnp.transpose(k, (1, 0, 2))
    vh_new = jnp.transpose(v, (1, 0, 2))

    # ---- KV cache: in-place window write (no full-cache concatenate) ----
    new_k_cache = lax.dynamic_update_slice(
        k_cache, kh_new.astype(k_cache.dtype), (0, offset, 0))
    new_v_cache = lax.dynamic_update_slice(
        v_cache, vh_new.astype(v_cache.dtype), (0, offset, 0))

    # ---- flash attention over the first total_seq_len cache rows ----
    attn = _flash_attention(qh.astype(new_k_cache.dtype),
                            new_k_cache, new_v_cache, attention_mask,
                            total_seq_len=total_seq_len,
                            causal_offset=offset)                # (H, S, D)

    # ---- output projection ----
    attn2 = jnp.transpose(attn, (1, 0, 2)).reshape(B * S, hidden)
    out = _linear(attn2, prepared["wo_t"], prepared["bo"], out_dtype=dtype)
    return out.reshape(B, S, hidden), new_k_cache, new_v_cache


# --------------------------------- main ---------------------------------------

if __name__ == "__main__":
    hidden_size = 32
    num_attention_heads = 4
    num_key_value_heads = 4
    head_dim = hidden_size // num_attention_heads
    max_sequence_length = 16
    batch = 1
    seq_len = 8
    total_seq_len = 12            # > seq_len: exercises the cache window write

    key = jax.random.PRNGKey(0)
    ks = jax.random.split(key, 9)
    init = lambda kk, shape: (jax.random.normal(kk, shape, jnp.float32)
                              * (1.0 / math.sqrt(hidden_size)))
    params = {
        "wq": init(ks[0], (hidden_size, hidden_size)),
        "bq": init(ks[1], (hidden_size,)),
        "wk": init(ks[2], (hidden_size, hidden_size)),
        "bk": init(ks[3], (hidden_size,)),
        "wv": init(ks[4], (hidden_size, hidden_size)),
        "bv": init(ks[5], (hidden_size,)),
        "wo": init(ks[6], (hidden_size, hidden_size)),
        "bo": init(ks[7], (hidden_size,)),
    }
    # At real Llama sizes pass dtype=jnp.bfloat16 (weights cast once, not per call).
    prepared = prepare_params(params, dtype=None)

    hidden_states = jax.random.normal(
        ks[8], (batch, seq_len, hidden_size), jnp.float32)

    # Fixed-capacity caches (padded to the KV tile), zero-initialized as in the
    # module __init__; stored head-major.
    k_cache, v_cache = init_kv_cache(num_key_value_heads, max_sequence_length,
                                     head_dim, jnp.float32)

    # Additive causal mask over (query_len, cache_len): query i may attend to
    # cache positions <= offset + i (same mask the kernel builds in-kernel).
    offset = total_seq_len - seq_len
    rows = jnp.arange(seq_len)[:, None]
    cols = jnp.arange(total_seq_len)[None, :]
    attention_mask = jnp.where(cols <= rows + offset, 0.0,
                               _MASK_VALUE).astype(jnp.float32)

    fwd = jax.jit(functools.partial(
        llama_attention_forward,
        total_seq_len=total_seq_len,
        num_heads=num_attention_heads,
        num_kv_heads=num_key_value_heads,
    ))

    # Path 1: explicit additive attention mask (module signature).
    out_m, kc_m, vc_m = fwd(prepared, hidden_states, attention_mask,
                            k_cache, v_cache)
    # Path 2: causal mask generated in-kernel (preferred: no (S, T) HBM mask,
    # fully-masked KV tiles skipped).
    out_c, kc_c, vc_c = fwd(prepared, hidden_states, None, k_cache, v_cache)
    jax.block_until_ready((out_m, out_c, kc_m, vc_m))

    cap = k_cache.shape[1]
    assert out_m.shape == (batch, seq_len, hidden_size)
    assert kc_m.shape == (num_key_value_heads, cap, head_dim)
    assert vc_m.shape == (num_key_value_heads, cap, head_dim)
    assert bool(jnp.isfinite(out_m).all()) and bool(jnp.isfinite(out_c).all())
    assert bool(jnp.allclose(out_m, out_c, atol=1e-5, rtol=1e-5)), \
        "explicit-mask and in-kernel-mask paths disagree"
    assert bool(jnp.allclose(kc_m, kc_c)) and bool(jnp.allclose(vc_m, vc_c))
    # Rows outside the written window [offset, total_seq_len) are untouched.
    assert bool(jnp.allclose(kc_m[:, :offset, :], 0.0))
    assert bool(jnp.allclose(kc_m[:, total_seq_len:, :], 0.0))
    print("KERNEL_OK")
</pallas_src>

<mosaic_0001>
module attributes {stable_mosaic.version = 11 : i64} {
  func.func @_linear_kernel(%arg0: i32, %arg1: i32, %arg2: i32, %arg3: memref<8x32xf32, #tpu.memory_space<vmem>>, %arg4: memref<32x96xf32, #tpu.memory_space<vmem>>, %arg5: memref<1x96xf32, #tpu.memory_space<vmem>>, %arg6: memref<8x96xf32, #tpu.memory_space<vmem>>, %arg7: memref<8x96xf32, #tpu.memory_space<vmem>>) attributes {dimension_semantics = [#tpu.dimension_semantics<parallel>, #tpu.dimension_semantics<parallel>, #tpu.dimension_semantics<arbitrary>], iteration_bounds = array<i64: 1, 1, 1>, scalar_prefetch = 0 : i64, scratch_operands = 1 : i64, tpu.core_type = #tpu.core_type<tc>, window_params = [{transform_indices = @transform_0, window_bounds = array<i64: 8, 32>}, {transform_indices = @transform_1, window_bounds = array<i64: 32, 96>}, {transform_indices = @transform_2, window_bounds = array<i64: 1, 96>}, {transform_indices = @transform_3, window_bounds = array<i64: 8, 96>}]} {
    %c0_i32 = arith.constant 0 : i32
    %0 = arith.cmpi eq, %arg2, %c0_i32 : i32
    %1 = arith.extui %0 : i1 to i32
    %c0_i32_0 = arith.constant 0 : i32
    %2 = arith.cmpi ne, %1, %c0_i32_0 : i32
    scf.if %2 {
      %cst_10 = arith.constant 0.000000e+00 : f32
      %12 = vector.broadcast %cst_10 : f32 to vector<8x96xf32>
      %c0_11 = arith.constant 0 : index
      %c0_12 = arith.constant 0 : index
      %13 = vector.load %arg7[%c0_11, %c0_12] : memref<8x96xf32, #tpu.memory_space<vmem>>, vector<8x96xf32>
      tpu.vector_store %arg7[%c0_11, %c0_12], %12 {strides = array<i32>} : memref<8x96xf32, #tpu.memory_space<vmem>>, vector<8x96xf32>,
    } else {
    }
    %c0 = arith.constant 0 : index
    %c0_1 = arith.constant 0 : index
    %3 = vector.load %arg7[%c0, %c0_1] : memref<8x96xf32, #tpu.memory_space<vmem>>, vector<8x96xf32>
    %c0_2 = arith.constant 0 : index
    %c0_3 = arith.constant 0 : index
    %4 = vector.load %arg3[%c0_2, %c0_3] : memref<8x32xf32, #tpu.memory_space<vmem>>, vector<8x32xf32>
    %c0_4 = arith.constant 0 : index
    %c0_5 = arith.constant 0 : index
    %5 = vector.load %arg4[%c0_4, %c0_5] : memref<32x96xf32, #tpu.memory_space<vmem>>, vector<32x96xf32>
    %cst = arith.constant dense<0.000000e+00> : vector<8x96xf32>
    %6 = tpu.matmul %4, %5, %cst {dimension_numbers = #tpu.dot_dimension_numbers<[1], [0], [0], [1], [0, 0, 1, 1], [], []>} : vector<8x32xf32>, vector<32x96xf32>, vector<8x96xf32> -> vector<8x96xf32>
    %7 = arith.addf %3, %6 : vector<8x96xf32>
    %c0_6 = arith.constant 0 : index
    %c0_7 = arith.constant 0 : index
    %8 = vector.load %arg7[%c0_6, %c0_7] : memref<8x96xf32, #tpu.memory_space<vmem>>, vector<8x96xf32>
    tpu.vector_store %arg7[%c0_6, %c0_7], %7 {strides = array<i32>} : memref<8x96xf32, #tpu.memory_space<vmem>>, vector<8x96xf32>,
    %c0_i32_8 = arith.constant 0 : i32
    %9 = arith.cmpi eq, %arg2, %c0_i32_8 : i32
    %10 = arith.extui %9 : i1 to i32
    %c0_i32_9 = arith.constant 0 : i32
    %11 = arith.cmpi ne, %10, %c0_i32_9 : i32
    scf.if %11 {
      %c0_10 = arith.constant 0 : index
      %c0_11 = arith.constant 0 : index
      %12 = vector.load %arg7[%c0_10, %c0_11] : memref<8x96xf32, #tpu.memory_space<vmem>>, vector<8x96xf32>
      %c0_12 = arith.constant 0 : index
      %c0_13 = arith.constant 0 : index
      %13 = vector.load %arg5[%c0_12, %c0_13] : memref<1x96xf32, #tpu.memory_space<vmem>>, vector<1x96xf32>
      %14 = vector.broadcast %13 : vector<1x96xf32> to vector<8x96xf32>
      %15 = arith.addf %12, %14 : vector<8x96xf32>
      %c0_14 = arith.constant 0 : index
      %c0_15 = arith.constant 0 : index
      %16 = vector.load %arg6[%c0_14, %c0_15] : memref<8x96xf32, #tpu.memory_space<vmem>>, vector<8x96xf32>
      tpu.vector_store %arg6[%c0_14, %c0_15], %15 {strides = array<i32>} : memref<8x96xf32, #tpu.memory_space<vmem>>, vector<8x96xf32>,
    } else {
    }
    return
  }
  func.func @transform_0(%arg0: i32, %arg1: i32, %arg2: i32) -> (i32, i32) {
    %c0_i32 = arith.constant 0 : i32
    return %arg0, %arg2 : i32, i32
  }
  func.func @transform_1(%arg0: i32, %arg1: i32, %arg2: i32) -> (i32, i32) {
    %c0_i32 = arith.constant 0 : i32
    return %arg2, %arg1 : i32, i32
  }
  func.func @transform_2(%arg0: i32, %arg1: i32, %arg2: i32) -> (i32, i32) {
    %c0_i32 = arith.constant 0 : i32
    %c0_i32_0 = arith.constant 0 : i32
    return %c0_i32, %arg1 : i32, i32
  }
  func.func @transform_3(%arg0: i32, %arg1: i32, %arg2: i32) -> (i32, i32) {
    %c0_i32 = arith.constant 0 : i32
    return %arg0, %arg1 : i32, i32
  }
}

module attributes {stable_mosaic.version = 11 : i64} {
  func.func @_attn_kernel_mask(%arg0: i32, %arg1: i32, %arg2: i32, %arg3: memref<4x8x8xf32, #tpu.memory_space<vmem>>, %arg4: memref<4x256x8xf32, #tpu.memory_space<vmem>>, %arg5: memref<4x256x8xf32, #tpu.memory_space<vmem>>, %arg6: memref<8x256xf32, #tpu.memory_space<vmem>>, %arg7: memref<4x8x8xf32, #tpu.memory_space<vmem>>, %arg8: memref<4x8x1xf32, #tpu.memory_space<vmem>>, %arg9: memref<4x8x1xf32, #tpu.memory_space<vmem>>, %arg10: memref<4x8x8xf32, #tpu.memory_space<vmem>>) attributes {dimension_semantics = [#tpu.dimension_semantics<parallel>, #tpu.dimension_semantics<parallel>, #tpu.dimension_semantics<arbitrary>], iteration_bounds = array<i64: 1, 1, 1>, scalar_prefetch = 0 : i64, scratch_operands = 3 : i64, tpu.core_type = #tpu.core_type<tc>, window_params = [{transform_indices = @transform_0, window_bounds = array<i64: 4, 8, 8>}, {transform_indices = @transform_1, window_bounds = array<i64: 4, 256, 8>}, {transform_indices = @transform_2, window_bounds = array<i64: 4, 256, 8>}, {transform_indices = @transform_3, window_bounds = array<i64: 8, 256>}, {transform_indices = @transform_4, window_bounds = array<i64: 4, 8, 8>}]} {
    %c0_i32 = arith.constant 0 : i32
    %0 = arith.cmpi eq, %arg2, %c0_i32 : i32
    %1 = arith.extui %0 : i1 to i32
    %c0_i32_0 = arith.constant 0 : i32
    %2 = arith.cmpi ne, %1, %c0_i32_0 : i32
    scf.if %2 {
      %cst_34 = arith.constant 0xFF800000 : f32
      %36 = vector.broadcast %cst_34 : f32 to vector<4x8x1xf32>
      %c0_35 = arith.constant 0 : index
      %c0_36 = arith.constant 0 : index
      %c0_37 = arith.constant 0 : index
      %37 = vector.load %arg8[%c0_35, %c0_36, %c0_37] : memref<4x8x1xf32, #tpu.memory_space<vmem>>, vector<4x8x1xf32>
      tpu.vector_store %arg8[%c0_35, %c0_36, %c0_37], %36 {strides = array<i32>} : memref<4x8x1xf32, #tpu.memory_space<vmem>>, vector<4x8x1xf32>,
      %cst_38 = arith.constant 0.000000e+00 : f32
      %38 = vector.broadcast %cst_38 : f32 to vector<4x8x1xf32>
      %c0_39 = arith.constant 0 : index
      %c0_40 = arith.constant 0 : index
      %c0_41 = arith.constant 0 : index
      %39 = vector.load %arg9[%c0_39, %c0_40, %c0_41] : memref<4x8x1xf32, #tpu.memory_space<vmem>>, vector<4x8x1xf32>
      tpu.vector_store %arg9[%c0_39, %c0_40, %c0_41], %38 {strides = array<i32>} : memref<4x8x1xf32, #tpu.memory_space<vmem>>, vector<4x8x1xf32>,
      %cst_42 = arith.constant 0.000000e+00 : f32
      %40 = vector.broadcast %cst_42 : f32 to vector<4x8x8xf32>
      %c0_43 = arith.constant 0 : index
      %c0_44 = arith.constant 0 : index
      %c0_45 = arith.constant 0 : index
      %41 = vector.load %arg10[%c0_43, %c0_44, %c0_45] : memref<4x8x8xf32, #tpu.memory_space<vmem>>, vector<4x8x8xf32>
      tpu.vector_store %arg10[%c0_43, %c0_44, %c0_45], %40 {strides = array<i32>} : memref<4x8x8xf32, #tpu.memory_space<vmem>>, vector<4x8x8xf32>,
    } else {
    }
    %c0 = arith.constant 0 : index
    %c0_1 = arith.constant 0 : index
    %3 = vector.load %arg6[%c0, %c0_1] : memref<8x256xf32, #tpu.memory_space<vmem>>, vector<8x256xf32>
    %c0_2 = arith.constant 0 : index
    %c0_3 = arith.constant 0 : index
    %c0_4 = arith.constant 0 : index
    %4 = vector.load %arg3[%c0_2, %c0_3, %c0_4] : memref<4x8x8xf32, #tpu.memory_space<vmem>>, vector<4x8x8xf32>
    %c0_5 = arith.constant 0 : index
    %c0_6 = arith.constant 0 : index
    %c0_7 = arith.constant 0 : index
    %5 = vector.load %arg4[%c0_5, %c0_6, %c0_7] : memref<4x256x8xf32, #tpu.memory_space<vmem>>, vector<4x256x8xf32>
    %c0_8 = arith.constant 0 : index
    %c0_9 = arith.constant 0 : index
    %c0_10 = arith.constant 0 : index
    %6 = vector.load %arg5[%c0_8, %c0_9, %c0_10] : memref<4x256x8xf32, #tpu.memory_space<vmem>>, vector<4x256x8xf32>
    "tpu.trace_start"() <{level = 10 : i32, message = "hqd,hkd->hqk"}> : () -> ()
    %cst = arith.constant dense<0.000000e+00> : vector<4x8x256xf32>
    %7 = tpu.matmul %4, %5, %cst {dimension_numbers = #tpu.dot_dimension_numbers<[2], [2], [1], [1], [0, 0, 0, 1, 1, 1], [0], [0]>} : vector<4x8x8xf32>, vector<4x256x8xf32>, vector<4x8x256xf32> -> vector<4x8x256xf32>
    "tpu.trace_stop"() : () -> ()
    %8 = vector.shape_cast %3 : vector<8x256xf32> to vector<1x8x256xf32>
    %9 = vector.broadcast %8 : vector<1x8x256xf32> to vector<4x8x256xf32>
    %10 = arith.addf %7, %9 : vector<4x8x256xf32>
    %c0_11 = arith.constant 0 : index
    %c0_12 = arith.constant 0 : index
    %c0_13 = arith.constant 0 : index
    %11 = vector.load %arg8[%c0_11, %c0_12, %c0_13] : memref<4x8x1xf32, #tpu.memory_space<vmem>>, vector<4x8x1xf32>
    %cst_14 = arith.constant dense<0xFF800000> : vector<4x8xf32>
    %12 = vector.multi_reduction <maximumf>, %10, %cst_14 [2] : vector<4x8x256xf32> to vector<4x8xf32>
    %13 = vector.shape_cast %12 : vector<4x8xf32> to vector<4x8x1xf32>
    %14 = arith.maximumf %11, %13 : vector<4x8x1xf32>
    %15 = arith.subf %11, %14 : vector<4x8x1xf32>
    %16 = math.exp %15 : vector<4x8x1xf32>
    %17 = vector.broadcast %14 : vector<4x8x1xf32> to vector<4x8x256xf32>
    %18 = arith.subf %10, %17 : vector<4x8x256xf32>
    %19 = math.exp %18 : vector<4x8x256xf32>
    %c0_15 = arith.constant 0 : index
    %c0_16 = arith.constant 0 : index
    %c0_17 = arith.constant 0 : index
    %20 = vector.load %arg9[%c0_15, %c0_16, %c0_17] : memref<4x8x1xf32, #tpu.memory_space<vmem>>, vector<4x8x1xf32>
    %21 = arith.mulf %16, %20 : vector<4x8x1xf32>
    %cst_18 = arith.constant dense<0.000000e+00> : vector<4x8xf32>
    %22 = vector.multi_reduction <add>, %19, %cst_18 [2] : vector<4x8x256xf32> to vector<4x8xf32>
    %23 = vector.shape_cast %22 : vector<4x8xf32> to vector<4x8x1xf32>
    %24 = arith.addf %21, %23 : vector<4x8x1xf32>
    %c0_19 = arith.constant 0 : index
    %c0_20 = arith.constant 0 : index
    %c0_21 = arith.constant 0 : index
    %25 = vector.load %arg9[%c0_19, %c0_20, %c0_21] : memref<4x8x1xf32, #tpu.memory_space<vmem>>, vector<4x8x1xf32>
    tpu.vector_store %arg9[%c0_19, %c0_20, %c0_21], %24 {strides = array<i32>} : memref<4x8x1xf32, #tpu.memory_space<vmem>>, vector<4x8x1xf32>,
    %c0_22 = arith.constant 0 : index
    %c0_23 = arith.constant 0 : index
    %c0_24 = arith.constant 0 : index
    %26 = vector.load %arg10[%c0_22, %c0_23, %c0_24] : memref<4x8x8xf32, #tpu.memory_space<vmem>>, vector<4x8x8xf32>
    %27 = vector.broadcast %16 : vector<4x8x1xf32> to vector<4x8x8xf32>
    %28 = arith.mulf %27, %26 : vector<4x8x8xf32>
    "tpu.trace_start"() <{level = 10 : i32, message = "hqk,hkd->hqd"}> : () -> ()
    %cst_25 = arith.constant dense<0.000000e+00> : vector<4x8x8xf32>
    %29 = tpu.matmul %19, %6, %cst_25 {dimension_numbers = #tpu.dot_dimension_numbers<[2], [1], [1], [2], [0, 0, 0, 1, 1, 2], [0], [0]>} : vector<4x8x256xf32>, vector<4x256x8xf32>, vector<4x8x8xf32> -> vector<4x8x8xf32>
    "tpu.trace_stop"() : () -> ()
    %30 = arith.addf %28, %29 : vector<4x8x8xf32>
    %c0_26 = arith.constant 0 : index
    %c0_27 = arith.constant 0 : index
    %c0_28 = arith.constant 0 : index
    %31 = vector.load %arg10[%c0_26, %c0_27, %c0_28] : memref<4x8x8xf32, #tpu.memory_space<vmem>>, vector<4x8x8xf32>
    tpu.vector_store %arg10[%c0_26, %c0_27, %c0_28], %30 {strides = array<i32>} : memref<4x8x8xf32, #tpu.memory_space<vmem>>, vector<4x8x8xf32>,
    %c0_29 = arith.constant 0 : index
    %c0_30 = arith.constant 0 : index
    %c0_31 = arith.constant 0 : index
    %32 = vector.load %arg8[%c0_29, %c0_30, %c0_31] : memref<4x8x1xf32, #tpu.memory_space<vmem>>, vector<4x8x1xf32>
    tpu.vector_store %arg8[%c0_29, %c0_30, %c0_31], %14 {strides = array<i32>} : memref<4x8x1xf32, #tpu.memory_space<vmem>>, vector<4x8x1xf32>,
    %c0_i32_32 = arith.constant 0 : i32
    %33 = arith.cmpi eq, %arg2, %c0_i32_32 : i32
    %34 = arith.extui %33 : i1 to i32
    %c0_i32_33 = arith.constant 0 : i32
    %35 = arith.cmpi ne, %34, %c0_i32_33 : i32
    scf.if %35 {
      %c0_34 = arith.constant 0 : index
      %c0_35 = arith.constant 0 : index
      %c0_36 = arith.constant 0 : index
      %36 = vector.load %arg10[%c0_34, %c0_35, %c0_36] : memref<4x8x8xf32, #tpu.memory_space<vmem>>, vector<4x8x8xf32>
      %c0_37 = arith.constant 0 : index
      %c0_38 = arith.constant 0 : index
      %c0_39 = arith.constant 0 : index
      %37 = vector.load %arg9[%c0_37, %c0_38, %c0_39] : memref<4x8x1xf32, #tpu.memory_space<vmem>>, vector<4x8x1xf32>
      %38 = tpu.reciprocal %37 {approx = true} : vector<4x8x1xf32> -> vector<4x8x1xf32>
      %39 = vector.broadcast %38 : vector<4x8x1xf32> to vector<4x8x8xf32>
      %40 = arith.mulf %36, %39 : vector<4x8x8xf32>
      %c0_40 = arith.constant 0 : index
      %c0_41 = arith.constant 0 : index
      %c0_42 = arith.constant 0 : index
      %41 = vector.load %arg7[%c0_40, %c0_41, %c0_42] : memref<4x8x8xf32, #tpu.memory_space<vmem>>, vector<4x8x8xf32>
      tpu.vector_store %arg7[%c0_40, %c0_41, %c0_42], %40 {strides = array<i32>} : memref<4x8x8xf32, #tpu.memory_space<vmem>>, vector<4x8x8xf32>,
    } else {
    }
    return
  }
  func.func @transform_0(%arg0: i32, %arg1: i32, %arg2: i32) -> (i32, i32, i32) {
    %c0_i32 = arith.constant 0 : i32
    %c0_i32_0 = arith.constant 0 : i32
    return %arg0, %arg1, %c0_i32 : i32, i32, i32
  }
  func.func @transform_1(%arg0: i32, %arg1: i32, %arg2: i32) -> (i32, i32, i32) {
    %c0_i32 = arith.constant 0 : i32
    %c0_i32_0 = arith.constant 0 : i32
    return %arg0, %arg2, %c0_i32 : i32, i32, i32
  }
  func.func @transform_2(%arg0: i32, %arg1: i32, %arg2: i32) -> (i32, i32, i32) {
    %c0_i32 = arith.constant 0 : i32
    %c0_i32_0 = arith.constant 0 : i32
    return %arg0, %arg2, %c0_i32 : i32, i32, i32
  }
  func.func @transform_3(%arg0: i32, %arg1: i32, %arg2: i32) -> (i32, i32) {
    %c0_i32 = arith.constant 0 : i32
    return %arg1, %arg2 : i32, i32
  }
  func.func @transform_4(%arg0: i32, %arg1: i32, %arg2: i32) -> (i32, i32, i32) {
    %c0_i32 = arith.constant 0 : i32
    %c0_i32_0 = arith.constant 0 : i32
    return %arg0, %arg1, %c0_i32 : i32, i32, i32
  }
}

module attributes {stable_mosaic.version = 11 : i64} {
  func.func @_linear_kernel(%arg0: i32, %arg1: i32, %arg2: i32, %arg3: memref<8x32xf32, #tpu.memory_space<vmem>>, %arg4: memref<32x32xf32, #tpu.memory_space<vmem>>, %arg5: memref<1x32xf32, #tpu.memory_space<vmem>>, %arg6: memref<8x32xf32, #tpu.memory_space<vmem>>, %arg7: memref<8x32xf32, #tpu.memory_space<vmem>>) attributes {dimension_semantics = [#tpu.dimension_semantics<parallel>, #tpu.dimension_semantics<parallel>, #tpu.dimension_semantics<arbitrary>], iteration_bounds = array<i64: 1, 1, 1>, scalar_prefetch = 0 : i64, scratch_operands = 1 : i64, tpu.core_type = #tpu.core_type<tc>, window_params = [{transform_indices = @transform_0, window_bounds = array<i64: 8, 32>}, {transform_indices = @transform_1, window_bounds = array<i64: 32, 32>}, {transform_indices = @transform_2, window_bounds = array<i64: 1, 32>}, {transform_indices = @transform_3, window_bounds = array<i64: 8, 32>}]} {
    %c0_i32 = arith.constant 0 : i32
    %0 = arith.cmpi eq, %arg2, %c0_i32 : i32
    %1 = arith.extui %0 : i1 to i32
    %c0_i32_0 = arith.constant 0 : i32
    %2 = arith.cmpi ne, %1, %c0_i32_0 : i32
    scf.if %2 {
      %cst_10 = arith.constant 0.000000e+00 : f32
      %12 = vector.broadcast %cst_10 : f32 to vector<8x32xf32>
      %c0_11 = arith.constant 0 : index
      %c0_12 = arith.constant 0 : index
      %13 = vector.load %arg7[%c0_11, %c0_12] : memref<8x32xf32, #tpu.memory_space<vmem>>, vector<8x32xf32>
      tpu.vector_store %arg7[%c0_11, %c0_12], %12 {strides = array<i32>} : memref<8x32xf32, #tpu.memory_space<vmem>>, vector<8x32xf32>,
    } else {
    }
    %c0 = arith.constant 0 : index
    %c0_1 = arith.constant 0 : index
    %3 = vector.load %arg7[%c0, %c0_1] : memref<8x32xf32, #tpu.memory_space<vmem>>, vector<8x32xf32>
    %c0_2 = arith.constant 0 : index
    %c0_3 = arith.constant 0 : index
    %4 = vector.load %arg3[%c0_2, %c0_3] : memref<8x32xf32, #tpu.memory_space<vmem>>, vector<8x32xf32>
    %c0_4 = arith.constant 0 : index
    %c0_5 = arith.constant 0 : index
    %5 = vector.load %arg4[%c0_4, %c0_5] : memref<32x32xf32, #tpu.memory_space<vmem>>, vector<32x32xf32>
    %cst = arith.constant dense<0.000000e+00> : vector<8x32xf32>
    %6 = tpu.matmul %4, %5, %cst {dimension_numbers = #tpu.dot_dimension_numbers<[1], [0], [0], [1], [0, 0, 1, 1], [], []>} : vector<8x32xf32>, vector<32x32xf32>, vector<8x32xf32> -> vector<8x32xf32>
    %7 = arith.addf %3, %6 : vector<8x32xf32>
    %c0_6 = arith.constant 0 : index
    %c0_7 = arith.constant 0 : index
    %8 = vector.load %arg7[%c0_6, %c0_7] : memref<8x32xf32, #tpu.memory_space<vmem>>, vector<8x32xf32>
    tpu.vector_store %arg7[%c0_6, %c0_7], %7 {strides = array<i32>} : memref<8x32xf32, #tpu.memory_space<vmem>>, vector<8x32xf32>,
    %c0_i32_8 = arith.constant 0 : i32
    %9 = arith.cmpi eq, %arg2, %c0_i32_8 : i32
    %10 = arith.extui %9 : i1 to i32
    %c0_i32_9 = arith.constant 0 : i32
    %11 = arith.cmpi ne, %10, %c0_i32_9 : i32
    scf.if %11 {
      %c0_10 = arith.constant 0 : index
      %c0_11 = arith.constant 0 : index
      %12 = vector.load %arg7[%c0_10, %c0_11] : memref<8x32xf32, #tpu.memory_space<vmem>>, vector<8x32xf32>
      %c0_12 = arith.constant 0 : index
      %c0_13 = arith.constant 0 : index
      %13 = vector.load %arg5[%c0_12, %c0_13] : memref<1x32xf32, #tpu.memory_space<vmem>>, vector<1x32xf32>
      %14 = vector.broadcast %13 : vector<1x32xf32> to vector<8x32xf32>
      %15 = arith.addf %12, %14 : vector<8x32xf32>
      %c0_14 = arith.constant 0 : index
      %c0_15 = arith.constant 0 : index
      %16 = vector.load %arg6[%c0_14, %c0_15] : memref<8x32xf32, #tpu.memory_space<vmem>>, vector<8x32xf32>
      tpu.vector_store %arg6[%c0_14, %c0_15], %15 {strides = array<i32>} : memref<8x32xf32, #tpu.memory_space<vmem>>, vector<8x32xf32>,
    } else {
    }
    return
  }
  func.func @transform_0(%arg0: i32, %arg1: i32, %arg2: i32) -> (i32, i32) {
    %c0_i32 = arith.constant 0 : i32
    return %arg0, %arg2 : i32, i32
  }
  func.func @transform_1(%arg0: i32, %arg1: i32, %arg2: i32) -> (i32, i32) {
    %c0_i32 = arith.constant 0 : i32
    return %arg2, %arg1 : i32, i32
  }
  func.func @transform_2(%arg0: i32, %arg1: i32, %arg2: i32) -> (i32, i32) {
    %c0_i32 = arith.constant 0 : i32
    %c0_i32_0 = arith.constant 0 : i32
    return %c0_i32, %arg1 : i32, i32
  }
  func.func @transform_3(%arg0: i32, %arg1: i32, %arg2: i32) -> (i32, i32) {
    %c0_i32 = arith.constant 0 : i32
    return %arg0, %arg1 : i32, i32
  }
}

</mosaic_0001>

<llo_original>
// kernel: llama_attention_forward.3
$region0: #{llama_attention_forward.3}
  #allocation0 [shape = 'u32[]', space=smem, size = 0x4, offset = 0x4, fixed_abs, tag = 'smem constant byte address 0x4 - core index']
  #allocation1 [shape = 'u32[72,128]{1,0:T(1,128)}', space=vmem, size = 0x9000, scoped, tag = 'internal scratch']
  #allocation2 [shape = 'f32[8,96]{1,0:T(8,128)}', space=vmem, size = 0x1000, scoped, tag = 'scratch operand']
  %s0 = inlined_call_operand.hbm [shape: f32[8,32], index: 0, kind: input, shape index: {}]
  %s1 = inlined_call_operand.hbm [shape: f32[32,96], index: 1, kind: input, shape index: {}]
  %s2 = inlined_call_operand.vmem [shape: f32[1,96], index: 2, kind: input, shape index: {}]
  %s3 = inlined_call_operand.vmem [shape: f32[8,96], index: 3, kind: output, shape index: {}]
  %s4 = sld [smem:[#allocation0]]
  $region38: #{llama_attention_forward.3} parent=0
    _
  %s6 = ssub.s32 1, %s4
  %s7 = scalar_select 0, %s6, %s4
  $region1: #{llama_attention_forward.3} parent=0
    #allocation3 [shape = 'u8[4096]{0}', space=vmem, size = 0x1000, scoped, tag = 'input window, operand 0, single buffered']
    #allocation4 [shape = 's32[1]{0}', space=sflag, size = 0x4, scoped, tag = 'scoped memory for llama_attention_forward.3']
    #allocation5 [shape = 'u8[16384]{0}', space=vmem, size = 0x4000, scoped, tag = 'input window, operand 1, single buffered']
    #allocation6 [shape = 's32[1]{0}', space=sflag, size = 0x4, scoped, tag = 'scoped memory for llama_attention_forward.3']
    %8 = vsyncpa [#allocation4], 0
    %9 = vsyncpa [#allocation6], 0
    // Predicated region
    $region2: #{llama_attention_forward.3} parent=1 // pred_check
      _
    $region3: #{llama_attention_forward.3} parent=1 // pred_check_branch
      %11 = sbr.rel (0) target = $region5
    $region4: #{llama_attention_forward.3} parent=1 // pred_region
      %13 = vsyncadd [#allocation4], 0
      %s15 = sshll.u32 %s0, 4
      %s16 = int_to_ptr.hbm [resolvable:$true] %s15
      %s17 = sshll.u32 [#allocation3], 4
      %s18 = int_to_ptr.vmem [resolvable:$true] %s17
      %20 = dma.hbm_to_vmem [thread:$0]  %s16, 128, %s18, [#allocation4]
    $region5: #{llama_attention_forward.3} parent=1 // pred_fallthru
      _
    // Predicated region
    $region6: #{llama_attention_forward.3} parent=1 // pred_check
      _
    $region7: #{llama_attention_forward.3} parent=1 // pred_check_branch
      %22 = sbr.rel (0) target = $region9
    $region8: #{llama_attention_forward.3} parent=1 // pred_region
      %24 = vsyncadd [#allocation6], 0
      %s25 = sshll.u32 %s1, 4
      %s26 = int_to_ptr.hbm [resolvable:$true] %s25
      %s27 = sshll.u32 [#allocation5], 4
      %s28 = int_to_ptr.vmem [resolvable:$true] %s27
      %33 = dma.hbm_to_vmem [thread:$0]  %s26, 512, %s28, [#allocation6], 128, 128, 8
    $region9: #{llama_attention_forward.3} parent=1 // pred_fallthru
      _
    // Predicated region
    $region10: #{llama_attention_forward.3} parent=1 // pred_check
      _
    $region11: #{llama_attention_forward.3} parent=1 // pred_check_branch
      %35 = sbr.rel (0) target = $region13
    $region12: #{llama_attention_forward.3} parent=1 // pred_region
      _
    $region13: #{llama_attention_forward.3} parent=1 // pred_fallthru
      _
    // Predicated region
    $region14: #{llama_attention_forward.3} parent=1 // pred_check
      _
    $region15: #{llama_attention_forward.3} parent=1 // pred_check_branch
      %37 = sbr.rel (0) target = $region17
    $region16: #{llama_attention_forward.3} parent=1 // pred_region
      %39 = dma.done [#allocation4], 128
    $region17: #{llama_attention_forward.3} parent=1 // pred_fallthru
      _
    // Predicated region
    $region18: #{llama_attention_forward.3} parent=1 // pred_check
      _
    $region19: #{llama_attention_forward.3} parent=1 // pred_check_branch
      %41 = sbr.rel (0) target = $region21
    $region20: #{llama_attention_forward.3} parent=1 // pred_region
      %43 = dma.done [#allocation6], 512
    $region21: #{llama_attention_forward.3} parent=1 // pred_fallthru
      _
    %p44 = scmp.eq.s32.totalorder 0, 0
    // Predicated region
    $region22: #{llama_attention_forward.3} parent=1 // pred_check
      %p45 = pneg %p44
    $region23: #{llama_attention_forward.3} parent=1 // pred_check_branch
      %47 = sbr.rel (%p45) target = $region25
    $region24: #{llama_attention_forward.3} parent=1 // pred_region
      %vm48 = vcmask 785408
      %49 = vst.msk [vmem:[#allocation2] sm:$0xff] %vm48, 0.0
    $region25: #{llama_attention_forward.3} parent=1 // pred_fallthru
      _
    %v50 = vld [vmem:[#allocation2] sm:$0xff]
    %v51 = vld [vmem:[#allocation3] sm:$0xff]
    %v52 = vld [vmem:[#allocation5] sm:$0xff]
    %v53 = vld [vmem:[#allocation5 + $0x8] sm:$0xff]
    %v54 = vld [vmem:[#allocation5 + $0x10] sm:$0xff]
    %v55 = vld [vmem:[#allocation5 + $0x18] sm:$0xff]
    %vm56 = vcmask 261120
    %v58 = vsel %vm56, %v51, 0
    %60 = vmatpush.msra.mxu0 0.0
    %61 = vmatpush.msra.mxu0 0.0
    %62 = vmatpush.msra.mxu0 0.0
    %63 = vmatpush.msra.mxu0 0.0
    %64 = vmatpush.msra.mxu0 0.0
    %65 = vmatpush.msra.mxu0 0.0
    %66 = vmatpush.msra.mxu0 0.0
    %67 = vmatpush.msra.mxu0 0.0
    %68 = vmatpush.msra.mxu0 0.0
    %69 = vmatpush.msra.mxu0 0.0
    %70 = vmatpush.msra.mxu0 0.0
    %71 = vmatpush.msra.mxu0 0.0
    %72 = vmatpush.msra.mxu0 %v55
    %73 = vmatpush.msra.mxu0 %v54
    %74 = vmatpush.msra.mxu0 %v53
    %75 = vmatpush.msra.mxu0 %v52
    %76 = vmatmul.f32.gmra.mxu0 %v58
    %v77 = vpop.f32.mrf.mxu0
    %v78 = vadd.f32 0.0, %v77
    %79 = vdwg.mxu0
    %v80 = vadd.f32 %v50, %v78
    %vm81 = vcmask 785408
    %82 = vst.msk [vmem:[#allocation2] sm:$0xff] %vm81, %v80
    // Predicated region
    $region26: #{llama_attention_forward.3} parent=1 // pred_check
      %p83 = pneg %p44
    $region27: #{llama_attention_forward.3} parent=1 // pred_check_branch
      %85 = sbr.rel (%p83) target = $region29
    $region28: #{llama_attention_forward.3} parent=1 // pred_region
      %v86 = vld [vmem:[#allocation2] sm:$0xff]
      %v87 = vld [vmem:[%s2] sm:$0x1]
      %v89 = vperm.slane %v87, 0
      %v91 = vadd.f32 %v86, %v89
      %92 = vst.msk [vmem:[%s3] sm:$0xff] %vm81, %v91
    $region29: #{llama_attention_forward.3} parent=1 // pred_fallthru
      _
    // Predicated region
    $region30: #{llama_attention_forward.3} parent=1 // pred_check
      _
    $region31: #{llama_attention_forward.3} parent=1 // pred_check_branch
      %94 = sbr.rel (0) target = $region33
    $region32: #{llama_attention_forward.3} parent=1 // pred_region
      _
    $region33: #{llama_attention_forward.3} parent=1 // pred_fallthru
      _
    // Predicated region
    $region34: #{llama_attention_forward.3} parent=1 // pred_check
      _
    $region35: #{llama_attention_forward.3} parent=1 // pred_check_branch
      %96 = sbr.rel (0) target = $region37
    $region36: #{llama_attention_forward.3} parent=1 // pred_region
      _
    $region37: #{llama_attention_forward.3} parent=1 // pred_fallthru
      _
    %97 = vsyncpa [#allocation4], 1
    %98 = vsyncpa [#allocation6], 1

// kernel: llama_attention_forward.5
$region0: #{llama_attention_forward.5}
  #allocation0 [shape = 'u32[]', space=smem, size = 0x4, offset = 0x4, fixed_abs, tag = 'smem constant byte address 0x4 - core index']
  #allocation1 [shape = 'u32[72,128]{1,0:T(1,128)}', space=vmem, size = 0x9000, scoped, tag = 'internal scratch']
  #allocation2 [shape = 'f32[8,32]{1,0:T(8,128)}', space=vmem, size = 0x1000, scoped, tag = 'scratch operand']
  %s0 = inlined_call_operand.vmem [shape: f32[8,32], index: 0, kind: input, shape index: {}]
  %s1 = inlined_call_operand.vmem [shape: f32[32,32], index: 1, kind: input, shape index: {}]
  %s2 = inlined_call_operand.vmem [shape: f32[1,32], index: 2, kind: input, shape index: {}]
  %s3 = inlined_call_operand.hbm [shape: f32[8,32], index: 3, kind: output, shape index: {}]
  %s4 = sld [smem:[#allocation0]]
  $region30: #{llama_attention_forward.5} parent=0
    _
  %s6 = ssub.s32 1, %s4
  %s7 = scalar_select 0, %s6, %s4
  $region1: #{llama_attention_forward.5} parent=0
    #allocation3 [shape = 'u8[4096]{0}', space=vmem, size = 0x1000, scoped, tag = 'output window, operand 0, single buffered']
    #allocation4 [shape = 's32[1]{0}', space=sflag, size = 0x4, scoped, tag = 'scoped memory for llama_attention_forward.5']
    %8 = vsyncpa [#allocation4], 0
    // Predicated region
    $region2: #{llama_attention_forward.5} parent=1 // pred_check
      _
    $region3: #{llama_attention_forward.5} parent=1 // pred_check_branch
      %10 = sbr.rel (0) target = $region5
    $region4: #{llama_attention_forward.5} parent=1 // pred_region
      _
    $region5: #{llama_attention_forward.5} parent=1 // pred_fallthru
      _
    // Predicated region
    $region6: #{llama_attention_forward.5} parent=1 // pred_check
      _
    $region7: #{llama_attention_forward.5} parent=1 // pred_check_branch
      %12 = sbr.rel (0) target = $region9
    $region8: #{llama_attention_forward.5} parent=1 // pred_region
      _
    $region9: #{llama_attention_forward.5} parent=1 // pred_fallthru
      _
    // Predicated region
    $region10: #{llama_attention_forward.5} parent=1 // pred_check
      _
    $region11: #{llama_attention_forward.5} parent=1 // pred_check_branch
      %14 = sbr.rel (0) target = $region13
    $region12: #{llama_attention_forward.5} parent=1 // pred_region
      _
    $region13: #{llama_attention_forward.5} parent=1 // pred_fallthru
      _
    %p15 = scmp.eq.s32.totalorder 0, 0
    // Predicated region
    $region14: #{llama_attention_forward.5} parent=1 // pred_check
      %p16 = pneg %p15
    $region15: #{llama_attention_forward.5} parent=1 // pred_check_branch
      %18 = sbr.rel (%p16) target = $region17
    $region16: #{llama_attention_forward.5} parent=1 // pred_region
      %vm19 = vcmask 261120
      %20 = vst.msk [vmem:[#allocation2] sm:$0xff] %vm19, 0.0
    $region17: #{llama_attention_forward.5} parent=1 // pred_fallthru
      _
    %v21 = vld [vmem:[#allocation2] sm:$0xff]
    %v22 = vld [vmem:[%s0] sm:$0xff]
    %v23 = vld [vmem:[%s1] sm:$0xff]
    %v24 = vld [vmem:[%s1 + $0x8] sm:$0xff]
    %v25 = vld [vmem:[%s1 + $0x10] sm:$0xff]
    %v26 = vld [vmem:[%s1 + $0x18] sm:$0xff]
    %vm27 = vcmask 261120
    %v29 = vsel %vm27, %v22, 0
    %31 = vmatpush.msra.mxu0 0.0
    %32 = vmatpush.msra.mxu0 0.0
    %33 = vmatpush.msra.mxu0 0.0
    %34 = vmatpush.msra.mxu0 0.0
    %35 = vmatpush.msra.mxu0 0.0
    %36 = vmatpush.msra.mxu0 0.0
    %37 = vmatpush.msra.mxu0 0.0
    %38 = vmatpush.msra.mxu0 0.0
    %39 = vmatpush.msra.mxu0 0.0
    %40 = vmatpush.msra.mxu0 0.0
    %41 = vmatpush.msra.mxu0 0.0
    %42 = vmatpush.msra.mxu0 0.0
    %43 = vmatpush.msra.mxu0 %v26
    %44 = vmatpush.msra.mxu0 %v25
    %45 = vmatpush.msra.mxu0 %v24
    %46 = vmatpush.msra.mxu0 %v23
    %47 = vmatmul.f32.gmra.mxu0 %v29
    %v48 = vpop.f32.mrf.mxu0
    %v49 = vadd.f32 0.0, %v48
    %50 = vdwg.mxu0
    %v51 = vadd.f32 %v21, %v49
    %52 = vst.msk [vmem:[#allocation2] sm:$0xff] %vm27, %v51
    // Predicated region
    $region18: #{llama_attention_forward.5} parent=1 // pred_check
      %p53 = pneg %p15
    $region19: #{llama_attention_forward.5} parent=1 // pred_check_branch
      %55 = sbr.rel (%p53) target = $region21
    $region20: #{llama_attention_forward.5} parent=1 // pred_region
      %v56 = vld [vmem:[#allocation2] sm:$0xff]
      %v57 = vld [vmem:[%s2] sm:$0x1]
      %v59 = vperm.slane %v57, 0
      %v61 = vadd.f32 %v56, %v59
      %62 = vst.msk [vmem:[#allocation3] sm:$0xff] %vm27, %v61
    $region21: #{llama_attention_forward.5} parent=1 // pred_fallthru
      _
    // Predicated region
    $region22: #{llama_attention_forward.5} parent=1 // pred_check
      _
    $region23: #{llama_attention_forward.5} parent=1 // pred_check_branch
      %64 = sbr.rel (0) target = $region25
    $region24: #{llama_attention_forward.5} parent=1 // pred_region
      %66 = vsyncadd [#allocation4], 0
      %s68 = sshll.u32 [#allocation3], 4
      %s69 = int_to_ptr.vmem [resolvable:$true] %s68
      %s70 = sshll.u32 %s3, 4
      %s71 = int_to_ptr.hbm [resolvable:$true] %s70
      %73 = dma.vmem_to_hbm [thread:$0]  %s69, 128, %s71, [#allocation4]
    $region25: #{llama_attention_forward.5} parent=1 // pred_fallthru
      _
    // Predicated region
    $region26: #{llama_attention_forward.5} parent=1 // pred_check
      _
    $region27: #{llama_attention_forward.5} parent=1 // pred_check_branch
      %75 = sbr.rel (0) target = $region29
    $region28: #{llama_attention_forward.5} parent=1 // pred_region
      %77 = dma.done [#allocation4], 128
    $region29: #{llama_attention_forward.5} parent=1 // pred_fallthru
      _
    %78 = vsyncpa [#allocation4], 1

// kernel: llama_attention_forward.4
$region0: #{llama_attention_forward.4}
  #allocation0 [shape = 'u32[]', space=smem, size = 0x4, offset = 0x4, fixed_abs, tag = 'smem constant byte address 0x4 - core index']
  #allocation1 [shape = 'u32[72,128]{1,0:T(1,128)}', space=vmem, size = 0x9000, scoped, tag = 'internal scratch']
  #allocation2 [shape = 'f32[4,8,1]{2,1,0:T(8,128)}', space=vmem, size = 0x4000, scoped, tag = 'scratch operand']
  #allocation3 [shape = 'f32[4,8,1]{2,1,0:T(8,128)}', space=vmem, size = 0x4000, scoped, tag = 'scratch operand']
  #allocation4 [shape = 'f32[4,8,8]{2,1,0:T(8,128)}', space=vmem, size = 0x4000, scoped, tag = 'scratch operand']
  %s0 = inlined_call_operand.vmem [shape: f32[4,8,8], index: 0, kind: input, shape index: {}]
  %s1 = inlined_call_operand.vmem [shape: f32[4,256,8], index: 1, kind: input, shape index: {}]
  %s2 = inlined_call_operand.vmem [shape: f32[4,256,8], index: 2, kind: input, shape index: {}]
  %s3 = inlined_call_operand.vmem [shape: f32[8,256], index: 3, kind: input, shape index: {}]
  %s4 = inlined_call_operand.vmem [shape: f32[4,8,8], index: 4, kind: output, shape index: {}]
  %s5 = sld [smem:[#allocation0]]
  $region34: #{llama_attention_forward.4} parent=0
    _
  %s7 = ssub.s32 1, %s5
  %s8 = scalar_select 0, %s7, %s5
  // Predicated region
  $region2: #{llama_attention_forward.4} parent=0 // pred_check
    _
  $region3: #{llama_attention_forward.4} parent=0 // pred_check_branch
    %10 = sbr.rel (0) target = $region5
  $region4: #{llama_attention_forward.4} parent=0 // pred_region
    _
  $region5: #{llama_attention_forward.4} parent=0 // pred_fallthru
    _
  // Predicated region
  $region6: #{llama_attention_forward.4} parent=0 // pred_check
    _
  $region7: #{llama_attention_forward.4} parent=0 // pred_check_branch
    %12 = sbr.rel (0) target = $region9
  $region8: #{llama_attention_forward.4} parent=0 // pred_region
    _
  $region9: #{llama_attention_forward.4} parent=0 // pred_fallthru
    _
  // Predicated region
  $region10: #{llama_attention_forward.4} parent=0 // pred_check
    _
  $region11: #{llama_attention_forward.4} parent=0 // pred_check_branch
    %14 = sbr.rel (0) target = $region13
  $region12: #{llama_attention_forward.4} parent=0 // pred_region
    _
  $region13: #{llama_attention_forward.4} parent=0 // pred_fallthru
    _
  // Predicated region
  $region14: #{llama_attention_forward.4} parent=0 // pred_check
    _
  $region15: #{llama_attention_forward.4} parent=0 // pred_check_branch
    %16 = sbr.rel (0) target = $region17
  $region16: #{llama_attention_forward.4} parent=0 // pred_region
    _
  $region17: #{llama_attention_forward.4} parent=0 // pred_fallthru
    _
  %p17 = scmp.eq.s32.totalorder 0, 0
  // Predicated region
  $region18: #{llama_attention_forward.4} parent=0 // pred_check
    %p18 = pneg %p17
  $region19: #{llama_attention_forward.4} parent=0 // pred_check_branch
    %20 = sbr.rel (%p18) target = $region21
  $region20: #{llama_attention_forward.4} parent=0 // pred_region
    %vm21 = vcmask 7168
    %22 = vst.msk [vmem:[#allocation2] sm:$0xff] %vm21, -inf
    %23 = vst.msk [vmem:[#allocation2 + $0x8] sm:$0xff] %vm21, -inf
    %24 = vst.msk [vmem:[#allocation2 + $0x10] sm:$0xff] %vm21, -inf
    %25 = vst.msk [vmem:[#allocation2 + $0x18] sm:$0xff] %vm21, -inf
    %26 = vst.msk [vmem:[#allocation3] sm:$0xff] %vm21, 0.0
    %27 = vst.msk [vmem:[#allocation3 + $0x8] sm:$0xff] %vm21, 0.0
    %28 = vst.msk [vmem:[#allocation3 + $0x10] sm:$0xff] %vm21, 0.0
    %29 = vst.msk [vmem:[#allocation3 + $0x18] sm:$0xff] %vm21, 0.0
    %vm30 = vcmask 64512
    %31 = vst.msk [vmem:[#allocation4] sm:$0xff] %vm30, 0.0
    %32 = vst.msk [vmem:[#allocation4 + $0x8] sm:$0xff] %vm30, 0.0
    %33 = vst.msk [vmem:[#allocation4 + $0x10] sm:$0xff] %vm30, 0.0
    %34 = vst.msk [vmem:[#allocation4 + $0x18] sm:$0xff] %vm30, 0.0
  $region21: #{llama_attention_forward.4} parent=0 // pred_fallthru
    _
  %v35 = vld [vmem:[%s3] sm:$0xff]
  %v36 = vld [vmem:[%s3 + $0x8] sm:$0xff]
  %v37 = vld [vmem:[%s0] sm:$0xff]
  %v38 = vld [vmem:[%s0 + $0x8] sm:$0xff]
  %v39 = vld [vmem:[%s0 + $0x10] sm:$0xff]
  %v40 = vld [vmem:[%s0 + $0x18] sm:$0xff]
  %v41 = vld [vmem:[%s1] sm:$0xff]
  %v42 = vld [vmem:[%s1 + $0x8] sm:$0xff]
  %v43 = vld [vmem:[%s1 + $0x10] sm:$0xff]
  %v44 = vld [vmem:[%s1 + $0x18] sm:$0xff]
  %v45 = vld [vmem:[%s1 + $0x20] sm:$0xff]
  %v46 = vld [vmem:[%s1 + $0x28] sm:$0xff]
  %v47 = vld [vmem:[%s1 + $0x30] sm:$0xff]
  %v48 = vld [vmem:[%s1 + $0x38] sm:$0xff]
  %v49 = vld [vmem:[%s1 + $0x40] sm:$0xff]
  %v50 = vld [vmem:[%s1 + $0x48] sm:$0xff]
  %v51 = vld [vmem:[%s1 + $0x50] sm:$0xff]
  %v52 = vld [vmem:[%s1 + $0x58] sm:$0xff]
  %v53 = vld [vmem:[%s1 + $0x60] sm:$0xff]
  %v54 = vld [vmem:[%s1 + $0x68] sm:$0xff]
  %v55 = vld [vmem:[%s1 + $0x70] sm:$0xff]
  %v56 = vld [vmem:[%s1 + $0x78] sm:$0xff]
  %v57 = vld [vmem:[%s1 + $0x80] sm:$0xff]
  %v58 = vld [vmem:[%s1 + $0x88] sm:$0xff]
  %v59 = vld [vmem:[%s1 + $0x90] sm:$0xff]
  %v60 = vld [vmem:[%s1 + $0x98] sm:$0xff]
  %v61 = vld [vmem:[%s1 + $0xa0] sm:$0xff]
  %v62 = vld [vmem:[%s1 + $0xa8] sm:$0xff]
  %v63 = vld [vmem:[%s1 + $0xb0] sm:$0xff]
  %v64 = vld [vmem:[%s1 + $0xb8] sm:$0xff]
  %v65 = vld [vmem:[%s1 + $0xc0] sm:$0xff]
  %v66 = vld [vmem:[%s1 + $0xc8] sm:$0xff]
  %v67 = vld [vmem:[%s1 + $0xd0] sm:$0xff]
  %v68 = vld [vmem:[%s1 + $0xd8] sm:$0xff]
  %v69 = vld [vmem:[%s1 + $0xe0] sm:$0xff]
  %v70 = vld [vmem:[%s1 + $0xe8] sm:$0xff]
  %v71 = vld [vmem:[%s1 + $0xf0] sm:$0xff]
  %v72 = vld [vmem:[%s1 + $0xf8] sm:$0xff]
  %v73 = vld [vmem:[%s1 + $0x100] sm:$0xff]
  %v74 = vld [vmem:[%s1 + $0x108] sm:$0xff]
  %v75 = vld [vmem:[%s1 + $0x110] sm:$0xff]
  %v76 = vld [vmem:[%s1 + $0x118] sm:$0xff]
  %v77 = vld [vmem:[%s1 + $0x120] sm:$0xff]
  %v78 = vld [vmem:[%s1 + $0x128] sm:$0xff]
  %v79 = vld [vmem:[%s1 + $0x130] sm:$0xff]
  %v80 = vld [vmem:[%s1 + $0x138] sm:$0xff]
  %v81 = vld [vmem:[%s1 + $0x140] sm:$0xff]
  %v82 = vld [vmem:[%s1 + $0x148] sm:$0xff]
  %v83 = vld [vmem:[%s1 + $0x150] sm:$0xff]
  %v84 = vld [vmem:[%s1 + $0x158] sm:$0xff]
  %v85 = vld [vmem:[%s1 + $0x160] sm:$0xff]
  %v86 = vld [vmem:[%s1 + $0x168] sm:$0xff]
  %v87 = vld [vmem:[%s1 + $0x170] sm:$0xff]
  %v88 = vld [vmem:[%s1 + $0x178] sm:$0xff]
  %v89 = vld [vmem:[%s1 + $0x180] sm:$0xff]
  %v90 = vld [vmem:[%s1 + $0x188] sm:$0xff]
  %v91 = vld [vmem:[%s1 + $0x190] sm:$0xff]
  %v92 = vld [vmem:[%s1 + $0x198] sm:$0xff]
  %v93 = vld [vmem:[%s1 + $0x1a0] sm:$0xff]
  %v94 = vld [vmem:[%s1 + $0x1a8] sm:$0xff]
  %v95 = vld [vmem:[%s1 + $0x1b0] sm:$0xff]
  %v96 = vld [vmem:[%s1 + $0x1b8] sm:$0xff]
  %v97 = vld [vmem:[%s1 + $0x1c0] sm:$0xff]
  %v98 = vld [vmem:[%s1 + $0x1c8] sm:$0xff]
  %v99 = vld [vmem:[%s1 + $0x1d0] sm:$0xff]
  %v100 = vld [vmem:[%s1 + $0x1d8] sm:$0xff]
  %v101 = vld [vmem:[%s1 + $0x1e0] sm:$0xff]
  %v102 = vld [vmem:[%s1 + $0x1e8] sm:$0xff]
  %v103 = vld [vmem:[%s1 + $0x1f0] sm:$0xff]
  %v104 = vld [vmem:[%s1 + $0x1f8] sm:$0xff]
  %v105 = vld [vmem:[%s1 + $0x200] sm:$0xff]
  %v106 = vld [vmem:[%s1 + $0x208] sm:$0xff]
  %v107 = vld [vmem:[%s1 + $0x210] sm:$0xff]
  %v108 = vld [vmem:[%s1 + $0x218] sm:$0xff]
  %v109 = vld [vmem:[%s1 + $0x220] sm:$0xff]
  %v110 = vld [vmem:[%s1 + $0x228] sm:$0xff]
  %v111 = vld [vmem:[%s1 + $0x230] sm:$0xff]
  %v112 = vld [vmem:[%s1 + $0x238] sm:$0xff]
  %v113 = vld [vmem:[%s1 + $0x240] sm:$0xff]
  %v114 = vld [vmem:[%s1 + $0x248] sm:$0xff]
  %v115 = vld [vmem:[%s1 + $0x250] sm:$0xff]
  %v116 = vld [vmem:[%s1 + $0x258] sm:$0xff]
  %v117 = vld [vmem:[%s1 + $0x260] sm:$0xff]
  %v118 = vld [vmem:[%s1 + $0x268] sm:$0xff]
  %v119 = vld [vmem:[%s1 + $0x270] sm:$0xff]
  %v120 = vld [vmem:[%s1 + $0x278] sm:$0xff]
  %v121 = vld [vmem:[%s1 + $0x280] sm:$0xff]
  %v122 = vld [vmem:[%s1 + $0x288] sm:$0xff]
  %v123 = vld [vmem:[%s1 + $0x290] sm:$0xff]
  %v124 = vld [vmem:[%s1 + $0x298] sm:$0xff]
  %v125 = vld [vmem:[%s1 + $0x2a0] sm:$0xff]
  %v126 = vld [vmem:[%s1 + $0x2a8] sm:$0xff]
  %v127 = vld [vmem:[%s1 + $0x2b0] sm:$0xff]
  %v128 = vld [vmem:[%s1 + $0x2b8] sm:$0xff]
  %v129 = vld [vmem:[%s1 + $0x2c0] sm:$0xff]
  %v130 = vld [vmem:[%s1 + $0x2c8] sm:$0xff]
  %v131 = vld [vmem:[%s1 + $0x2d0] sm:$0xff]
  %v132 = vld [vmem:[%s1 + $0x2d8] sm:$0xff]
  %v133 = vld [vmem:[%s1 + $0x2e0] sm:$0xff]
  %v134 = vld [vmem:[%s1 + $0x2e8] sm:$0xff]
  %v135 = vld [vmem:[%s1 + $0x2f0] sm:$0xff]
  %v136 = vld [vmem:[%s1 + $0x2f8] sm:$0xff]
  %v137 = vld [vmem:[%s1 + $0x300] sm:$0xff]
  %v138 = vld [vmem:[%s1 + $0x308] sm:$0xff]
  %v139 = vld [vmem:[%s1 + $0x310] sm:$0xff]
  %v140 = vld [vmem:[%s1 + $0x318] sm:$0xff]
  %v141 = vld [vmem:[%s1 + $0x320] sm:$0xff]
  %v142 = vld [vmem:[%s1 + $0x328] sm:$0xff]
  %v143 = vld [vmem:[%s1 + $0x330] sm:$0xff]
  %v144 = vld [vmem:[%s1 + $0x338] sm:$0xff]
  %v145 = vld [vmem:[%s1 + $0x340] sm:$0xff]
  %v146 = vld [vmem:[%s1 + $0x348] sm:$0xff]
  %v147 = vld [vmem:[%s1 + $0x350] sm:$0xff]
  %v148 = vld [vmem:[%s1 + $0x358] sm:$0xff]
  %v149 = vld [vmem:[%s1 + $0x360] sm:$0xff]
  %v150 = vld [vmem:[%s1 + $0x368] sm:$0xff]
  %v151 = vld [vmem:[%s1 + $0x370] sm:$0xff]
  %v152 = vld [vmem:[%s1 + $0x378] sm:$0xff]
  %v153 = vld [vmem:[%s1 + $0x380] sm:$0xff]
  %v154 = vld [vmem:[%s1 + $0x388] sm:$0xff]
  %v155 = vld [vmem:[%s1 + $0x390] sm:$0xff]
  %v156 = vld [vmem:[%s1 + $0x398] sm:$0xff]
  %v157 = vld [vmem:[%s1 + $0x3a0] sm:$0xff]
  %v158 = vld [vmem:[%s1 + $0x3a8] sm:$0xff]
  %v159 = vld [vmem:[%s1 + $0x3b0] sm:$0xff]
  %v160 = vld [vmem:[%s1 + $0x3b8] sm:$0xff]
  %v161 = vld [vmem:[%s1 + $0x3c0] sm:$0xff]
  %v162 = vld [vmem:[%s1 + $0x3c8] sm:$0xff]
  %v163 = vld [vmem:[%s1 + $0x3d0] sm:$0xff]
  %v164 = vld [vmem:[%s1 + $0x3d8] sm:$0xff]
  %v165 = vld [vmem:[%s1 + $0x3e0] sm:$0xff]
  %v166 = vld [vmem:[%s1 + $0x3e8] sm:$0xff]
  %v167 = vld [vmem:[%s1 + $0x3f0] sm:$0xff]
  %v168 = vld [vmem:[%s1 + $0x3f8] sm:$0xff]
  %v169 = vld [vmem:[%s2] sm:$0xff]
  %v170 = vld [vmem:[%s2 + $0x8] sm:$0xff]
  %v171 = vld [vmem:[%s2 + $0x10] sm:$0xff]
  %v172 = vld [vmem:[%s2 + $0x18] sm:$0xff]
  %v173 = vld [vmem:[%s2 + $0x20] sm:$0xff]
  %v174 = vld [vmem:[%s2 + $0x28] sm:$0xff]
  %v175 = vld [vmem:[%s2 + $0x30] sm:$0xff]
  %v176 = vld [vmem:[%s2 + $0x38] sm:$0xff]
  %v177 = vld [vmem:[%s2 + $0x40] sm:$0xff]
  %v178 = vld [vmem:[%s2 + $0x48] sm:$0xff]
  %v179 = vld [vmem:[%s2 + $0x50] sm:$0xff]
  %v180 = vld [vmem:[%s2 + $0x58] sm:$0xff]
  %v181 = vld [vmem:[%s2 + $0x60] sm:$0xff]
  %v182 = vld [vmem:[%s2 + $0x68] sm:$0xff]
  %v183 = vld [vmem:[%s2 + $0x70] sm:$0xff]
  %v184 = vld [vmem:[%s2 + $0x78] sm:$0xff]
  %v185 = vld [vmem:[%s2 + $0x80] sm:$0xff]
  %v186 = vld [vmem:[%s2 + $0x88] sm:$0xff]
  %v187 = vld [vmem:[%s2 + $0x90] sm:$0xff]
  %v188 = vld [vmem:[%s2 + $0x98] sm:$0xff]
  %v189 = vld [vmem:[%s2 + $0xa0] sm:$0xff]
  %v190 = vld [vmem:[%s2 + $0xa8] sm:$0xff]
  %v191 = vld [vmem:[%s2 + $0xb0] sm:$0xff]
  %v192 = vld [vmem:[%s2 + $0xb8] sm:$0xff]
  %v193 = vld [vmem:[%s2 + $0xc0] sm:$0xff]
  %v194 = vld [vmem:[%s2 + $0xc8] sm:$0xff]
  %v195 = vld [vmem:[%s2 + $0xd0] sm:$0xff]
  %v196 = vld [vmem:[%s2 + $0xd8] sm:$0xff]
  %v197 = vld [vmem:[%s2 + $0xe0] sm:$0xff]
  %v198 = vld [vmem:[%s2 + $0xe8] sm:$0xff]
  %v199 = vld [vmem:[%s2 + $0xf0] sm:$0xff]
  %v200 = vld [vmem:[%s2 + $0xf8] sm:$0xff]
  %v201 = vld [vmem:[%s2 + $0x100] sm:$0xff]
  %v202 = vld [vmem:[%s2 + $0x108] sm:$0xff]
  %v203 = vld [vmem:[%s2 + $0x110] sm:$0xff]
  %v204 = vld [vmem:[%s2 + $0x118] sm:$0xff]
  %v205 = vld [vmem:[%s2 + $0x120] sm:$0xff]
  %v206 = vld [vmem:[%s2 + $0x128] sm:$0xff]
  %v207 = vld [vmem:[%s2 + $0x130] sm:$0xff]
  %v208 = vld [vmem:[%s2 + $0x138] sm:$0xff]
  %v209 = vld [vmem:[%s2 + $0x140] sm:$0xff]
  %v210 = vld [vmem:[%s2 + $0x148] sm:$0xff]
  %v211 = vld [vmem:[%s2 + $0x150] sm:$0xff]
  %v212 = vld [vmem:[%s2 + $0x158] sm:$0xff]
  %v213 = vld [vmem:[%s2 + $0x160] sm:$0xff]
  %v214 = vld [vmem:[%s2 + $0x168] sm:$0xff]
  %v215 = vld [vmem:[%s2 + $0x170] sm:$0xff]
  %v216 = vld [vmem:[%s2 + $0x178] sm:$0xff]
  %v217 = vld [vmem:[%s2 + $0x180] sm:$0xff]
  %v218 = vld [vmem:[%s2 + $0x188] sm:$0xff]
  %v219 = vld [vmem:[%s2 + $0x190] sm:$0xff]
  %v220 = vld [vmem:[%s2 + $0x198] sm:$0xff]
  %v221 = vld [vmem:[%s2 + $0x1a0] sm:$0xff]
  %v222 = vld [vmem:[%s2 + $0x1a8] sm:$0xff]
  %v223 = vld [vmem:[%s2 + $0x1b0] sm:$0xff]
  %v224 = vld [vmem:[%s2 + $0x1b8] sm:$0xff]
  %v225 = vld [vmem:[%s2 + $0x1c0] sm:$0xff]
  %v226 = vld [vmem:[%s2 + $0x1c8] sm:$0xff]
  %v227 = vld [vmem:[%s2 + $0x1d0] sm:$0xff]
  %v228 = vld [vmem:[%s2 + $0x1d8] sm:$0xff]
  %v229 = vld [vmem:[%s2 + $0x1e0] sm:$0xff]
  %v230 = vld [vmem:[%s2 + $0x1e8] sm:$0xff]
  %v231 = vld [vmem:[%s2 + $0x1f0] sm:$0xff]
  %v232 = vld [vmem:[%s2 + $0x1f8] sm:$0xff]
  %v233 = vld [vmem:[%s2 + $0x200] sm:$0xff]
  %v234 = vld [vmem:[%s2 + $0x208] sm:$0xff]
  %v235 = vld [vmem:[%s2 + $0x210] sm:$0xff]
  %v236 = vld [vmem:[%s2 + $0x218] sm:$0xff]
  %v237 = vld [vmem:[%s2 + $0x220] sm:$0xff]
  %v238 = vld [vmem:[%s2 + $0x228] sm:$0xff]
  %v239 = vld [vmem:[%s2 + $0x230] sm:$0xff]
  %v240 = vld [vmem:[%s2 + $0x238] sm:$0xff]
  %v241 = vld [vmem:[%s2 + $0x240] sm:$0xff]
  %v242 = vld [vmem:[%s2 + $0x248] sm:$0xff]
  %v243 = vld [vmem:[%s2 + $0x250] sm:$0xff]
  %v244 = vld [vmem:[%s2 + $0x258] sm:$0xff]
  %v245 = vld [vmem:[%s2 + $0x260] sm:$0xff]
  %v246 = vld [vmem:[%s2 + $0x268] sm:$0xff]
  %v247 = vld [vmem:[%s2 + $0x270] sm:$0xff]
  %v248 = vld [vmem:[%s2 + $0x278] sm:$0xff]
  %v249 = vld [vmem:[%s2 + $0x280] sm:$0xff]
  %v250 = vld [vmem:[%s2 + $0x288] sm:$0xff]
  %v251 = vld [vmem:[%s2 + $0x290] sm:$0xff]
  %v252 = vld [vmem:[%s2 + $0x298] sm:$0xff]
  %v253 = vld [vmem:[%s2 + $0x2a0] sm:$0xff]
  %v254 = vld [vmem:[%s2 + $0x2a8] sm:$0xff]
  %v255 = vld [vmem:[%s2 + $0x2b0] sm:$0xff]
  %v256 = vld [vmem:[%s2 + $0x2b8] sm:$0xff]
  %v257 = vld [vmem:[%s2 + $0x2c0] sm:$0xff]
  %v258 = vld [vmem:[%s2 + $0x2c8] sm:$0xff]
  %v259 = vld [vmem:[%s2 + $0x2d0] sm:$0xff]
  %v260 = vld [vmem:[%s2 + $0x2d8] sm:$0xff]
  %v261 = vld [vmem:[%s2 + $0x2e0] sm:$0xff]
  %v262 = vld [vmem:[%s2 + $0x2e8] sm:$0xff]
  %v263 = vld [vmem:[%s2 + $0x2f0] sm:$0xff]
  %v264 = vld [vmem:[%s2 + $0x2f8] sm:$0xff]
  %v265 = vld [vmem:[%s2 + $0x300] sm:$0xff]
  %v266 = vld [vmem:[%s2 + $0x308] sm:$0xff]
  %v267 = vld [vmem:[%s2 + $0x310] sm:$0xff]
  %v268 = vld [vmem:[%s2 + $0x318] sm:$0xff]
  %v269 = vld [vmem:[%s2 + $0x320] sm:$0xff]
  %v270 = vld [vmem:[%s2 + $0x328] sm:$0xff]
  %v271 = vld [vmem:[%s2 + $0x330] sm:$0xff]
  %v272 = vld [vmem:[%s2 + $0x338] sm:$0xff]
  %v273 = vld [vmem:[%s2 + $0x340] sm:$0xff]
  %v274 = vld [vmem:[%s2 + $0x348] sm:$0xff]
  %v275 = vld [vmem:[%s2 + $0x350] sm:$0xff]
  %v276 = vld [vmem:[%s2 + $0x358] sm:$0xff]
  %v277 = vld [vmem:[%s2 + $0x360] sm:$0xff]
  %v278 = vld [vmem:[%s2 + $0x368] sm:$0xff]
  %v279 = vld [vmem:[%s2 + $0x370] sm:$0xff]
  %v280 = vld [vmem:[%s2 + $0x378] sm:$0xff]
  %v281 = vld [vmem:[%s2 + $0x380] sm:$0xff]
  %v282 = vld [vmem:[%s2 + $0x388] sm:$0xff]
  %v283 = vld [vmem:[%s2 + $0x390] sm:$0xff]
  %v284 = vld [vmem:[%s2 + $0x398] sm:$0xff]
  %v285 = vld [vmem:[%s2 + $0x3a0] sm:$0xff]
  %v286 = vld [vmem:[%s2 + $0x3a8] sm:$0xff]
  %v287 = vld [vmem:[%s2 + $0x3b0] sm:$0xff]
  %v288 = vld [vmem:[%s2 + $0x3b8] sm:$0xff]
  %v289 = vld [vmem:[%s2 + $0x3c0] sm:$0xff]
  %v290 = vld [vmem:[%s2 + $0x3c8] sm:$0xff]
  %v291 = vld [vmem:[%s2 + $0x3d0] sm:$0xff]
  %v292 = vld [vmem:[%s2 + $0x3d8] sm:$0xff]
  %v293 = vld [vmem:[%s2 + $0x3e0] sm:$0xff]
  %v294 = vld [vmem:[%s2 + $0x3e8] sm:$0xff]
  %v295 = vld [vmem:[%s2 + $0x3f0] sm:$0xff]
  %v296 = vld [vmem:[%s2 + $0x3f8] sm:$0xff]
  %vm297 = vcmask 64512
  %v299 = vsel %vm297, %v37, 0
  %v302 = vsel %vm297, %v41, 0
  %v305 = vsel %vm297, %v42, 0
  %v308 = vsel %vm297, %v43, 0
  %v311 = vsel %vm297, %v44, 0
  %v314 = vsel %vm297, %v45, 0
  %v317 = vsel %vm297, %v46, 0
  %v320 = vsel %vm297, %v47, 0
  %v323 = vsel %vm297, %v48, 0
  %v326 = vsel %vm297, %v49, 0
  %v329 = vsel %vm297, %v50, 0
  %v332 = vsel %vm297, %v51, 0
  %v335 = vsel %vm297, %v52, 0
  %v338 = vsel %vm297, %v53, 0
  %v341 = vsel %vm297, %v54, 0
  %v344 = vsel %vm297, %v55, 0
  %v347 = vsel %vm297, %v56, 0
  %v350 = vsel %vm297, %v57, 0
  %v353 = vsel %vm297, %v58, 0
  %v356 = vsel %vm297, %v59, 0
  %v359 = vsel %vm297, %v60, 0
  %v362 = vsel %vm297, %v61, 0
  %v365 = vsel %vm297, %v62, 0
  %v368 = vsel %vm297, %v63, 0
  %v371 = vsel %vm297, %v64, 0
  %v374 = vsel %vm297, %v65, 0
  %v377 = vsel %vm297, %v66, 0
  %v380 = vsel %vm297, %v67, 0
  %v383 = vsel %vm297, %v68, 0
  %v386 = vsel %vm297, %v69, 0
  %v389 = vsel %vm297, %v70, 0
  %v392 = vsel %vm297, %v71, 0
  %v395 = vsel %vm297, %v72, 0
  %397 = vmatpush.xpose.msra.mxu0 %v347
  %398 = vmatpush.xpose.msra.mxu0 %v344
  %399 = vmatpush.xpose.msra.mxu0 %v341
  %400 = vmatpush.xpose.msra.mxu0 %v338
  %401 = vmatpush.xpose.msra.mxu0 %v335
  %402 = vmatpush.xpose.msra.mxu0 %v332
  %403 = vmatpush.xpose.msra.mxu0 %v329
  %404 = vmatpush.xpose.msra.mxu0 %v326
  %405 = vmatpush.xpose.msra.mxu0 %v323
  %406 = vmatpush.xpose.msra.mxu0 %v320
  %407 = vmatpush.xpose.msra.mxu0 %v317
  %408 = vmatpush.xpose.msra.mxu0 %v314
  %409 = vmatpush.xpose.msra.mxu0 %v311
  %410 = vmatpush.xpose.msra.mxu0 %v308
  %411 = vmatpush.xpose.msra.mxu0 %v305
  %412 = vmatpush.xpose.msra.mxu0 %v302
  %413 = vmatmul.f32.gmra.mxu0 %v299
  %v414 = vpop.f32.mrf.mxu0
  %v415 = vadd.f32 %v35, %v414
  %416 = vdwg.mxu0
  %417 = vmatpush.xpose.msra.mxu0 %v395
  %418 = vmatpush.xpose.msra.mxu0 %v392
  %419 = vmatpush.xpose.msra.mxu0 %v389
  %420 = vmatpush.xpose.msra.mxu0 %v386
  %421 = vmatpush.xpose.msra.mxu0 %v383
  %422 = vmatpush.xpose.msra.mxu0 %v380
  %423 = vmatpush.xpose.msra.mxu0 %v377
  %424 = vmatpush.xpose.msra.mxu0 %v374
  %425 = vmatpush.xpose.msra.mxu0 %v371
  %426 = vmatpush.xpose.msra.mxu0 %v368
  %427 = vmatpush.xpose.msra.mxu0 %v365
  %428 = vmatpush.xpose.msra.mxu0 %v362
  %429 = vmatpush.xpose.msra.mxu0 %v359
  %430 = vmatpush.xpose.msra.mxu0 %v356
  %431 = vmatpush.xpose.msra.mxu0 %v353
  %432 = vmatpush.xpose.msra.mxu0 %v350
  %433 = vmatmul.f32.gmra.mxu0 %v299
  %v434 = vpop.f32.mrf.mxu0
  %v435 = vadd.f32 %v36, %v434
  %436 = vdwg.mxu0
  %v438 = vsel %vm297, %v38, 0
  %v441 = vsel %vm297, %v73, 0
  %v444 = vsel %vm297, %v74, 0
  %v447 = vsel %vm297, %v75, 0
  %v450 = vsel %vm297, %v76, 0
  %v453 = vsel %vm297, %v77, 0
  %v456 = vsel %vm297, %v78, 0
  %v459 = vsel %vm297, %v79, 0
  %v462 = vsel %vm297, %v80, 0
  %v465 = vsel %vm297, %v81, 0
  %v468 = vsel %vm297, %v82, 0
  %v471 = vsel %vm297, %v83, 0
  %v474 = vsel %vm297, %v84, 0
  %v477 = vsel %vm297, %v85, 0
  %v480 = vsel %vm297, %v86, 0
  %v483 = vsel %vm297, %v87, 0
  %v486 = vsel %vm297, %v88, 0
  %v489 = vsel %vm297, %v89, 0
  %v492 = vsel %vm297, %v90, 0
  %v495 = vsel %vm297, %v91, 0
  %v498 = vsel %vm297, %v92, 0
  %v501 = vsel %vm297, %v93, 0
  %v504 = vsel %vm297, %v94, 0
  %v507 = vsel %vm297, %v95, 0
  %v510 = vsel %vm297, %v96, 0
  %v513 = vsel %vm297, %v97, 0
  %v516 = vsel %vm297, %v98, 0
  %v519 = vsel %vm297, %v99, 0
  %v522 = vsel %vm297, %v100, 0
  %v525 = vsel %vm297, %v101, 0
  %v528 = vsel %vm297, %v102, 0
  %v531 = vsel %vm297, %v103, 0
  %v534 = vsel %vm297, %v104, 0
  %536 = vmatpush.xpose.msra.mxu0 %v486
  %537 = vmatpush.xpose.msra.mxu0 %v483
  %538 = vmatpush.xpose.msra.mxu0 %v480
  %539 = vmatpush.xpose.msra.mxu0 %v477
  %540 = vmatpush.xpose.msra.mxu0 %v474
  %541 = vmatpush.xpose.msra.mxu0 %v471
  %542 = vmatpush.xpose.msra.mxu0 %v468
  %543 = vmatpush.xpose.msra.mxu0 %v465
  %544 = vmatpush.xpose.msra.mxu0 %v462
  %545 = vmatpush.xpose.msra.mxu0 %v459
  %546 = vmatpush.xpose.msra.mxu0 %v456
  %547 = vmatpush.xpose.msra.mxu0 %v453
  %548 = vmatpush.xpose.msra.mxu0 %v450
  %549 = vmatpush.xpose.msra.mxu0 %v447
  %550 = vmatpush.xpose.msra.mxu0 %v444
  %551 = vmatpush.xpose.msra.mxu0 %v441
  %552 = vmatmul.f32.gmra.mxu0 %v438
  %v553 = vpop.f32.mrf.mxu0
  %v554 = vadd.f32 %v35, %v553
  %555 = vdwg.mxu0
  %556 = vmatpush.xpose.msra.mxu0 %v534
  %557 = vmatpush.xpose.msra.mxu0 %v531
  %558 = vmatpush.xpose.msra.mxu0 %v528
  %559 = vmatpush.xpose.msra.mxu0 %v525
  %560 = vmatpush.xpose.msra.mxu0 %v522
  %561 = vmatpush.xpose.msra.mxu0 %v519
  %562 = vmatpush.xpose.msra.mxu0 %v516
  %563 = vmatpush.xpose.msra.mxu0 %v513
  %564 = vmatpush.xpose.msra.mxu0 %v510
  %565 = vmatpush.xpose.msra.mxu0 %v507
  %566 = vmatpush.xpose.msra.mxu0 %v504
  %567 = vmatpush.xpose.msra.mxu0 %v501
  %568 = vmatpush.xpose.msra.mxu0 %v498
  %569 = vmatpush.xpose.msra.mxu0 %v495
  %570 = vmatpush.xpose.msra.mxu0 %v492
  %571 = vmatpush.xpose.msra.mxu0 %v489
  %572 = vmatmul.f32.gmra.mxu0 %v438
  %v573 = vpop.f32.mrf.mxu0
  %v574 = vadd.f32 %v36, %v573
  %575 = vdwg.mxu0
  %v577 = vsel %vm297, %v39, 0
  %v580 = vsel %vm297, %v105, 0
  %v583 = vsel %vm297, %v106, 0
  %v586 = vsel %vm297, %v107, 0
  %v589 = vsel %vm297, %v108, 0
  %v592 = vsel %vm297, %v109, 0
  %v595 = vsel %vm297, %v110, 0
  %v598 = vsel %vm297, %v111, 0
  %v601 = vsel %vm297, %v112, 0
  %v604 = vsel %vm297, %v113, 0
  %v607 = vsel %vm297, %v114, 0
  %v610 = vsel %vm297, %v115, 0
  %v613 = vsel %vm297, %v116, 0
  %v616 = vsel %vm297, %v117, 0
  %v619 = vsel %vm297, %v118, 0
  %v622 = vsel %vm297, %v119, 0
  %v625 = vsel %vm297, %v120, 0
  %v628 = vsel %vm297, %v121, 0
  %v631 = vsel %vm297, %v122, 0
  %v634 = vsel %vm297, %v123, 0
  %v637 = vsel %vm297, %v124, 0
  %v640 = vsel %vm297, %v125, 0
  %v643 = vsel %vm297, %v126, 0
  %v646 = vsel %vm297, %v127, 0
  %v649 = vsel %vm297, %v128, 0
  %v652 = vsel %vm297, %v129, 0
  %v655 = vsel %vm297, %v130, 0
  %v658 = vsel %vm297, %v131, 0
  %v661 = vsel %vm297, %v132, 0
  %v664 = vsel %vm297, %v133, 0
  %v667 = vsel %vm297, %v134, 0
  %v670 = vsel %vm297, %v135, 0
  %v673 = vsel %vm297, %v136, 0
  %675 = vmatpush.xpose.msra.mxu0 %v625
  %676 = vmatpush.xpose.msra.mxu0 %v622
  %677 = vmatpush.xpose.msra.mxu0 %v619
  %678 = vmatpush.xpose.msra.mxu0 %v616
  %679 = vmatpush.xpose.msra.mxu0 %v613
  %680 = vmatpush.xpose.msra.mxu0 %v610
  %681 = vmatpush.xpose.msra.mxu0 %v607
  %682 = vmatpush.xpose.msra.mxu0 %v604
  %683 = vmatpush.xpose.msra.mxu0 %v601
  %684 = vmatpush.xpose.msra.mxu0 %v598
  %685 = vmatpush.xpose.msra.mxu0 %v595
  %686 = vmatpush.xpose.msra.mxu0 %v592
  %687 = vmatpush.xpose.msra.mxu0 %v589
  %688 = vmatpush.xpose.msra.mxu0 %v586
  %689 = vmatpush.xpose.msra.mxu0 %v583
  %690 = vmatpush.xpose.msra.mxu0 %v580
  %691 = vmatmul.f32.gmra.mxu0 %v577
  %v692 = vpop.f32.mrf.mxu0
  %v693 = vadd.f32 %v35, %v692
  %694 = vdwg.mxu0
  %695 = vmatpush.xpose.msra.mxu0 %v673
  %696 = vmatpush.xpose.msra.mxu0 %v670
  %697 = vmatpush.xpose.msra.mxu0 %v667
  %698 = vmatpush.xpose.msra.mxu0 %v664
  %699 = vmatpush.xpose.msra.mxu0 %v661
  %700 = vmatpush.xpose.msra.mxu0 %v658
  %701 = vmatpush.xpose.msra.mxu0 %v655
  %702 = vmatpush.xpose.msra.mxu0 %v652
  %703 = vmatpush.xpose.msra.mxu0 %v649
  %704 = vmatpush.xpose.msra.mxu0 %v646
  %705 = vmatpush.xpose.msra.mxu0 %v643
  %706 = vmatpush.xpose.msra.mxu0 %v640
  %707 = vmatpush.xpose.msra.mxu0 %v637
  %708 = vmatpush.xpose.msra.mxu0 %v634
  %709 = vmatpush.xpose.msra.mxu0 %v631
  %710 = vmatpush.xpose.msra.mxu0 %v628
  %711 = vmatmul.f32.gmra.mxu0 %v577
  %v712 = vpop.f32.mrf.mxu0
  %v713 = vadd.f32 %v36, %v712
  %714 = vdwg.mxu0
  %v716 = vsel %vm297, %v40, 0
  %v719 = vsel %vm297, %v137, 0
  %v722 = vsel %vm297, %v138, 0
  %v725 = vsel %vm297, %v139, 0
  %v728 = vsel %vm297, %v140, 0
  %v731 = vsel %vm297, %v141, 0
  %v734 = vsel %vm297, %v142, 0
  %v737 = vsel %vm297, %v143, 0
  %v740 = vsel %vm297, %v144, 0
  %v743 = vsel %vm297, %v145, 0
  %v746 = vsel %vm297, %v146, 0
  %v749 = vsel %vm297, %v147, 0
  %v752 = vsel %vm297, %v148, 0
  %v755 = vsel %vm297, %v149, 0
  %v758 = vsel %vm297, %v150, 0
  %v761 = vsel %vm297, %v151, 0
  %v764 = vsel %vm297, %v152, 0
  %v767 = vsel %vm297, %v153, 0
  %v770 = vsel %vm297, %v154, 0
  %v773 = vsel %vm297, %v155, 0
  %v776 = vsel %vm297, %v156, 0
  %v779 = vsel %vm297, %v157, 0
  %v782 = vsel %vm297, %v158, 0
  %v785 = vsel %vm297, %v159, 0
  %v788 = vsel %vm297, %v160, 0
  %v791 = vsel %vm297, %v161, 0
  %v794 = vsel %vm297, %v162, 0
  %v797 = vsel %vm297, %v163, 0
  %v800 = vsel %vm297, %v164, 0
  %v803 = vsel %vm297, %v165, 0
  %v806 = vsel %vm297, %v166, 0
  %v809 = vsel %vm297, %v167, 0
  %v812 = vsel %vm297, %v168, 0
  %814 = vmatpush.xpose.msra.mxu0 %v764
  %815 = vmatpush.xpose.msra.mxu0 %v761
  %816 = vmatpush.xpose.msra.mxu0 %v758
  %817 = vmatpush.xpose.msra.mxu0 %v755
  %818 = vmatpush.xpose.msra.mxu0 %v752
  %819 = vmatpush.xpose.msra.mxu0 %v749
  %820 = vmatpush.xpose.msra.mxu0 %v746
  %821 = vmatpush.xpose.msra.mxu0 %v743
  %822 = vmatpush.xpose.msra.mxu0 %v740
  %823 = vmatpush.xpose.msra.mxu0 %v737
  %824 = vmatpush.xpose.msra.mxu0 %v734
  %825 = vmatpush.xpose.msra.mxu0 %v731
  %826 = vmatpush.xpose.msra.mxu0 %v728
  %827 = vmatpush.xpose.msra.mxu0 %v725
  %828 = vmatpush.xpose.msra.mxu0 %v722
  %829 = vmatpush.xpose.msra.mxu0 %v719
  %830 = vmatmul.f32.gmra.mxu0 %v716
  %v831 = vpop.f32.mrf.mxu0
  %v832 = vadd.f32 %v35, %v831
  %833 = vdwg.mxu0
  %834 = vmatpush.xpose.msra.mxu0 %v812
  %835 = vmatpush.xpose.msra.mxu0 %v809
  %836 = vmatpush.xpose.msra.mxu0 %v806
  %837 = vmatpush.xpose.msra.mxu0 %v803
  %838 = vmatpush.xpose.msra.mxu0 %v800
  %839 = vmatpush.xpose.msra.mxu0 %v797
  %840 = vmatpush.xpose.msra.mxu0 %v794
  %841 = vmatpush.xpose.msra.mxu0 %v791
  %842 = vmatpush.xpose.msra.mxu0 %v788
  %843 = vmatpush.xpose.msra.mxu0 %v785
  %844 = vmatpush.xpose.msra.mxu0 %v782
  %845 = vmatpush.xpose.msra.mxu0 %v779
  %846 = vmatpush.xpose.msra.mxu0 %v776
  %847 = vmatpush.xpose.msra.mxu0 %v773
  %848 = vmatpush.xpose.msra.mxu0 %v770
  %849 = vmatpush.xpose.msra.mxu0 %v767
  %850 = vmatmul.f32.gmra.mxu0 %v716
  %v851 = vpop.f32.mrf.mxu0
  %v852 = vadd.f32 %v36, %v851
  %853 = vdwg.mxu0
  %v854 = vld [vmem:[#allocation2] sm:$0xff]
  %v855 = vld [vmem:[#allocation2 + $0x8] sm:$0xff]
  %v856 = vld [vmem:[#allocation2 + $0x10] sm:$0xff]
  %v857 = vld [vmem:[#allocation2 + $0x18] sm:$0xff]
  %v858 = vmax.f32 %v415, %v435
  %859 = vmax.xlane.f32.xlu0 %v858
  %v860 = vpop.xlane.xlu0 %859
  %v861 = vmax.f32 %v554, %v574
  %862 = vmax.xlane.f32.xlu0 %v861
  %v863 = vpop.xlane.xlu0 %862
  %v864 = vmax.f32 %v693, %v713
  %865 = vmax.xlane.f32.xlu0 %v864
  %v866 = vpop.xlane.xlu0 %865
  %v867 = vmax.f32 %v832, %v852
  %868 = vmax.xlane.f32.xlu0 %v867
  %v869 = vpop.xlane.xlu0 %868
  %v870 = vmax.f32 %v854, %v860
  %v871 = vmax.f32 %v855, %v863
  %v872 = vmax.f32 %v856, %v866
  %v873 = vmax.f32 %v857, %v869
  %v874 = vsub.f32 %v854, %v870
  %v875 = vsub.f32 %v855, %v871
  %v876 = vsub.f32 %v856, %v872
  %v877 = vsub.f32 %v857, %v873
  %v878 = vmul.f32 %v874, 1.442695
  %v879 = vpow.pop %v878
  %v880 = vmul.f32 %v875, 1.442695
  %v881 = vpow.pop %v880
  %v882 = vmul.f32 %v876, 1.442695
  %v883 = vpow.pop %v882
  %v884 = vmul.f32 %v877, 1.442695
  %v885 = vpow.pop %v884
  %887 = vset.pattern.permute.xlu0 0
  %888 = vperm.xlu0 %887, %v870
  %v889 = vpop.permute.xlu0 %888
  %892 = vset.pattern.permute.xlu0 0
  %893 = vperm.xlu0 %892, %v871
  %v894 = vpop.permute.xlu0 %893
  %897 = vset.pattern.permute.xlu0 0
  %898 = vperm.xlu0 %897, %v872
  %v899 = vpop.permute.xlu0 %898
  %902 = vset.pattern.permute.xlu0 0
  %903 = vperm.xlu0 %902, %v873
  %v904 = vpop.permute.xlu0 %903
  %v906 = vsub.f32 %v415, %v889
  %v907 = vsub.f32 %v435, %v889
  %v908 = vsub.f32 %v554, %v894
  %v909 = vsub.f32 %v574, %v894
  %v910 = vsub.f32 %v693, %v899
  %v911 = vsub.f32 %v713, %v899
  %v912 = vsub.f32 %v832, %v904
  %v913 = vsub.f32 %v852, %v904
  %v914 = vmul.f32 %v906, 1.442695
  %v915 = vpow.pop %v914
  %v916 = vmul.f32 %v907, 1.442695
  %v917 = vpow.pop %v916
  %v918 = vmul.f32 %v908, 1.442695
  %v919 = vpow.pop %v918
  %v920 = vmul.f32 %v909, 1.442695
  %v921 = vpow.pop %v920
  %v922 = vmul.f32 %v910, 1.442695
  %v923 = vpow.pop %v922
  %v924 = vmul.f32 %v911, 1.442695
  %v925 = vpow.pop %v924
  %v926 = vmul.f32 %v912, 1.442695
  %v927 = vpow.pop %v926
  %v928 = vmul.f32 %v913, 1.442695
  %v929 = vpow.pop %v928
  %v930 = vld [vmem:[#allocation3] sm:$0xff]
  %v931 = vld [vmem:[#allocation3 + $0x8] sm:$0xff]
  %v932 = vld [vmem:[#allocation3 + $0x10] sm:$0xff]
  %v933 = vld [vmem:[#allocation3 + $0x18] sm:$0xff]
  %v934 = vmul.f32 %v879, %v930
  %v935 = vmul.f32 %v881, %v931
  %v936 = vmul.f32 %v883, %v932
  %v937 = vmul.f32 %v885, %v933
  %v938 = vadd.f32 %v915, %v917
  %939 = vadd.xlane.f32.xlu0 %v938
  %v940 = vpop.xlane.xlu0 %939
  %v941 = vadd.f32 %v919, %v921
  %942 = vadd.xlane.f32.xlu0 %v941
  %v943 = vpop.xlane.xlu0 %942
  %v944 = vadd.f32 %v923, %v925
  %945 = vadd.xlane.f32.xlu0 %v944
  %v946 = vpop.xlane.xlu0 %945
  %v947 = vadd.f32 %v927, %v929
  %948 = vadd.xlane.f32.xlu0 %v947
  %v949 = vpop.xlane.xlu0 %948
  %v950 = vadd.f32 %v934, %v940
  %v951 = vadd.f32 %v935, %v943
  %v952 = vadd.f32 %v936, %v946
  %v953 = vadd.f32 %v937, %v949
  %vm954 = vcmask 7168
  %955 = vst.msk [vmem:[#allocation3] sm:$0xff] %vm954, %v950
  %956 = vst.msk [vmem:[#allocation3 + $0x8] sm:$0xff] %vm954, %v951
  %957 = vst.msk [vmem:[#allocation3 + $0x10] sm:$0xff] %vm954, %v952
  %958 = vst.msk [vmem:[#allocation3 + $0x18] sm:$0xff] %vm954, %v953
  %v959 = vld [vmem:[#allocation4] sm:$0xff]
  %v960 = vld [vmem:[#allocation4 + $0x8] sm:$0xff]
  %v961 = vld [vmem:[#allocation4 + $0x10] sm:$0xff]
  %v962 = vld [vmem:[#allocation4 + $0x18] sm:$0xff]
  %964 = vset.pattern.permute.xlu0 0
  %965 = vperm.xlu0 %964, %v879
  %v966 = vpop.permute.xlu0 %965
  %969 = vset.pattern.permute.xlu0 0
  %970 = vperm.xlu0 %969, %v881
  %v971 = vpop.permute.xlu0 %970
  %974 = vset.pattern.permute.xlu0 0
  %975 = vperm.xlu0 %974, %v883
  %v976 = vpop.permute.xlu0 %975
  %979 = vset.pattern.permute.xlu0 0
  %980 = vperm.xlu0 %979, %v885
  %v981 = vpop.permute.xlu0 %980
  %v983 = vmul.f32 %v966, %v959
  %v984 = vmul.f32 %v971, %v960
  %v985 = vmul.f32 %v976, %v961
  %v986 = vmul.f32 %v981, %v962
  %987 = vmatpush.msra.mxu0 %v184
  %988 = vmatpush.msra.mxu0 %v183
  %989 = vmatpush.msra.mxu0 %v182
  %990 = vmatpush.msra.mxu0 %v181
  %991 = vmatpush.msra.mxu0 %v180
  %992 = vmatpush.msra.mxu0 %v179
  %993 = vmatpush.msra.mxu0 %v178
  %994 = vmatpush.msra.mxu0 %v177
  %995 = vmatpush.msra.mxu0 %v176
  %996 = vmatpush.msra.mxu0 %v175
  %997 = vmatpush.msra.mxu0 %v174
  %998 = vmatpush.msra.mxu0 %v173
  %999 = vmatpush.msra.mxu0 %v172
  %1000 = vmatpush.msra.mxu0 %v171
  %1001 = vmatpush.msra.mxu0 %v170
  %1002 = vmatpush.msra.mxu0 %v169
  %1003 = vmatmul.f32.gmra.mxu0 %v915
  %v1004 = vpop.f32.mrf.mxu0
  %v1005 = vadd.f32 0.0, %v1004
  %1006 = vdwg.mxu0
  %1007 = vmatpush.msra.mxu0 %v200
  %1008 = vmatpush.msra.mxu0 %v199
  %1009 = vmatpush.msra.mxu0 %v198
  %1010 = vmatpush.msra.mxu0 %v197
  %1011 = vmatpush.msra.mxu0 %v196
  %1012 = vmatpush.msra.mxu0 %v195
  %1013 = vmatpush.msra.mxu0 %v194
  %1014 = vmatpush.msra.mxu0 %v193
  %1015 = vmatpush.msra.mxu0 %v192
  %1016 = vmatpush.msra.mxu0 %v191
  %1017 = vmatpush.msra.mxu0 %v190
  %1018 = vmatpush.msra.mxu0 %v189
  %1019 = vmatpush.msra.mxu0 %v188
  %1020 = vmatpush.msra.mxu0 %v187
  %1021 = vmatpush.msra.mxu0 %v186
  %1022 = vmatpush.msra.mxu0 %v185
  %1023 = vmatmul.f32.gmra.mxu0 %v917
  %v1024 = vpop.f32.mrf.mxu0
  %v1025 = vadd.f32 %v1005, %v1024
  %1026 = vdwg.mxu0
  %1027 = vmatpush.msra.mxu0 %v216
  %1028 = vmatpush.msra.mxu0 %v215
  %1029 = vmatpush.msra.mxu0 %v214
  %1030 = vmatpush.msra.mxu0 %v213
  %1031 = vmatpush.msra.mxu0 %v212
  %1032 = vmatpush.msra.mxu0 %v211
  %1033 = vmatpush.msra.mxu0 %v210
  %1034 = vmatpush.msra.mxu0 %v209
  %1035 = vmatpush.msra.mxu0 %v208
  %1036 = vmatpush.msra.mxu0 %v207
  %1037 = vmatpush.msra.mxu0 %v206
  %1038 = vmatpush.msra.mxu0 %v205
  %1039 = vmatpush.msra.mxu0 %v204
  %1040 = vmatpush.msra.mxu0 %v203
  %1041 = vmatpush.msra.mxu0 %v202
  %1042 = vmatpush.msra.mxu0 %v201
  %1043 = vmatmul.f32.gmra.mxu0 %v919
  %v1044 = vpop.f32.mrf.mxu0
  %v1045 = vadd.f32 0.0, %v1044
  %1046 = vdwg.mxu0
  %1047 = vmatpush.msra.mxu0 %v232
  %1048 = vmatpush.msra.mxu0 %v231
  %1049 = vmatpush.msra.mxu0 %v230
  %1050 = vmatpush.msra.mxu0 %v229
  %1051 = vmatpush.msra.mxu0 %v228
  %1052 = vmatpush.msra.mxu0 %v227
  %1053 = vmatpush.msra.mxu0 %v226
  %1054 = vmatpush.msra.mxu0 %v225
  %1055 = vmatpush.msra.mxu0 %v224
  %1056 = vmatpush.msra.mxu0 %v223
  %1057 = vmatpush.msra.mxu0 %v222
  %1058 = vmatpush.msra.mxu0 %v221
  %1059 = vmatpush.msra.mxu0 %v220
  %1060 = vmatpush.msra.mxu0 %v219
  %1061 = vmatpush.msra.mxu0 %v218
  %1062 = vmatpush.msra.mxu0 %v217
  %1063 = vmatmul.f32.gmra.mxu0 %v921
  %v1064 = vpop.f32.mrf.mxu0
  %v1065 = vadd.f32 %v1045, %v1064
  %1066 = vdwg.mxu0
  %1067 = vmatpush.msra.mxu0 %v248
  %1068 = vmatpush.msra.mxu0 %v247
  %1069 = vmatpush.msra.mxu0 %v246
  %1070 = vmatpush.msra.mxu0 %v245
  %1071 = vmatpush.msra.mxu0 %v244
  %1072 = vmatpush.msra.mxu0 %v243
  %1073 = vmatpush.msra.mxu0 %v242
  %1074 = vmatpush.msra.mxu0 %v241
  %1075 = vmatpush.msra.mxu0 %v240
  %1076 = vmatpush.msra.mxu0 %v239
  %1077 = vmatpush.msra.mxu0 %v238
  %1078 = vmatpush.msra.mxu0 %v237
  %1079 = vmatpush.msra.mxu0 %v236
  %1080 = vmatpush.msra.mxu0 %v235
  %1081 = vmatpush.msra.mxu0 %v234
  %1082 = vmatpush.msra.mxu0 %v233
  %1083 = vmatmul.f32.gmra.mxu0 %v923
  %v1084 = vpop.f32.mrf.mxu0
  %v1085 = vadd.f32 0.0, %v1084
  %1086 = vdwg.mxu0
  %1087 = vmatpush.msra.mxu0 %v264
  %1088 = vmatpush.msra.mxu0 %v263
  %1089 = vmatpush.msra.mxu0 %v262
  %1090 = vmatpush.msra.mxu0 %v261
  %1091 = vmatpush.msra.mxu0 %v260
  %1092 = vmatpush.msra.mxu0 %v259
  %1093 = vmatpush.msra.mxu0 %v258
  %1094 = vmatpush.msra.mxu0 %v257
  %1095 = vmatpush.msra.mxu0 %v256
  %1096 = vmatpush.msra.mxu0 %v255
  %1097 = vmatpush.msra.mxu0 %v254
  %1098 = vmatpush.msra.mxu0 %v253
  %1099 = vmatpush.msra.mxu0 %v252
  %1100 = vmatpush.msra.mxu0 %v251
  %1101 = vmatpush.msra.mxu0 %v250
  %1102 = vmatpush.msra.mxu0 %v249
  %1103 = vmatmul.f32.gmra.mxu0 %v925
  %v1104 = vpop.f32.mrf.mxu0
  %v1105 = vadd.f32 %v1085, %v1104
  %1106 = vdwg.mxu0
  %1107 = vmatpush.msra.mxu0 %v280
  %1108 = vmatpush.msra.mxu0 %v279
  %1109 = vmatpush.msra.mxu0 %v278
  %1110 = vmatpush.msra.mxu0 %v277
  %1111 = vmatpush.msra.mxu0 %v276
  %1112 = vmatpush.msra.mxu0 %v275
  %1113 = vmatpush.msra.mxu0 %v274
  %1114 = vmatpush.msra.mxu0 %v273
  %1115 = vmatpush.msra.mxu0 %v272
  %1116 = vmatpush.msra.mxu0 %v271
  %1117 = vmatpush.msra.mxu0 %v270
  %1118 = vmatpush.msra.mxu0 %v269
  %1119 = vmatpush.msra.mxu0 %v268
  %1120 = vmatpush.msra.mxu0 %v267
  %1121 = vmatpush.msra.mxu0 %v266
  %1122 = vmatpush.msra.mxu0 %v265
  %1123 = vmatmul.f32.gmra.mxu0 %v927
  %v1124 = vpop.f32.mrf.mxu0
  %v1125 = vadd.f32 0.0, %v1124
  %1126 = vdwg.mxu0
  %1127 = vmatpush.msra.mxu0 %v296
  %1128 = vmatpush.msra.mxu0 %v295
  %1129 = vmatpush.msra.mxu0 %v294
  %1130 = vmatpush.msra.mxu0 %v293
  %1131 = vmatpush.msra.mxu0 %v292
  %1132 = vmatpush.msra.mxu0 %v291
  %1133 = vmatpush.msra.mxu0 %v290
  %1134 = vmatpush.msra.mxu0 %v289
  %1135 = vmatpush.msra.mxu0 %v288
  %1136 = vmatpush.msra.mxu0 %v287
  %1137 = vmatpush.msra.mxu0 %v286
  %1138 = vmatpush.msra.mxu0 %v285
  %1139 = vmatpush.msra.mxu0 %v284
  %1140 = vmatpush.msra.mxu0 %v283
  %1141 = vmatpush.msra.mxu0 %v282
  %1142 = vmatpush.msra.mxu0 %v281
  %1143 = vmatmul.f32.gmra.mxu0 %v929
  %v1144 = vpop.f32.mrf.mxu0
  %v1145 = vadd.f32 %v1125, %v1144
  %1146 = vdwg.mxu0
  %v1147 = vadd.f32 %v983, %v1025
  %v1148 = vadd.f32 %v984, %v1065
  %v1149 = vadd.f32 %v985, %v1105
  %v1150 = vadd.f32 %v986, %v1145
  %1151 = vst.msk [vmem:[#allocation4] sm:$0xff] %vm297, %v1147
  %1152 = vst.msk [vmem:[#allocation4 + $0x8] sm:$0xff] %vm297, %v1148
  %1153 = vst.msk [vmem:[#allocation4 + $0x10] sm:$0xff] %vm297, %v1149
  %1154 = vst.msk [vmem:[#allocation4 + $0x18] sm:$0xff] %vm297, %v1150
  %1155 = vst.msk [vmem:[#allocation2] sm:$0xff] %vm954, %v870
  %1156 = vst.msk [vmem:[#allocation2 + $0x8] sm:$0xff] %vm954, %v871
  %1157 = vst.msk [vmem:[#allocation2 + $0x10] sm:$0xff] %vm954, %v872
  %1158 = vst.msk [vmem:[#allocation2 + $0x18] sm:$0xff] %vm954, %v873
  // Predicated region
  $region22: #{llama_attention_forward.4} parent=0 // pred_check
    %p1159 = pneg %p17
  $region23: #{llama_attention_forward.4} parent=0 // pred_check_branch
    %1161 = sbr.rel (%p1159) target = $region25
  $region24: #{llama_attention_forward.4} parent=0 // pred_region
    %v1162 = vld [vmem:[#allocation4] sm:$0xff]
    %v1163 = vld [vmem:[#allocation4 + $0x8] sm:$0xff]
    %v1164 = vld [vmem:[#allocation4 + $0x10] sm:$0xff]
    %v1165 = vld [vmem:[#allocation4 + $0x18] sm:$0xff]
    %v1166 = vld [vmem:[#allocation3] sm:$0xff]
    %v1167 = vld [vmem:[#allocation3 + $0x8] sm:$0xff]
    %v1168 = vld [vmem:[#allocation3 + $0x10] sm:$0xff]
    %v1169 = vld [vmem:[#allocation3 + $0x18] sm:$0xff]
    %v1170 = vrcp.pop %v1166
    %v1171 = vrcp.pop %v1167
    %v1172 = vrcp.pop %v1168
    %v1173 = vrcp.pop %v1169
    %1175 = vset.pattern.permute.xlu0 0
    %1176 = vperm.xlu0 %1175, %v1170
    %v1177 = vpop.permute.xlu0 %1176
    %1180 = vset.pattern.permute.xlu0 0
    %1181 = vperm.xlu0 %1180, %v1171
    %v1182 = vpop.permute.xlu0 %1181
    %1185 = vset.pattern.permute.xlu0 0
    %1186 = vperm.xlu0 %1185, %v1172
    %v1187 = vpop.permute.xlu0 %1186
    %1190 = vset.pattern.permute.xlu0 0
    %1191 = vperm.xlu0 %1190, %v1173
    %v1192 = vpop.permute.xlu0 %1191
    %v1194 = vmul.f32 %v1162, %v1177
    %v1195 = vmul.f32 %v1163, %v1182
    %v1196 = vmul.f32 %v1164, %v1187
    %v1197 = vmul.f32 %v1165, %v1192
    %1198 = vst.msk [vmem:[%s4] sm:$0xff] %vm297, %v1194
    %1199 = vst.msk [vmem:[%s4 + $0x8] sm:$0xff] %vm297, %v1195
    %1200 = vst.msk [vmem:[%s4 + $0x10] sm:$0xff] %vm297, %v1196
    %1201 = vst.msk [vmem:[%s4 + $0x18] sm:$0xff] %vm297, %v1197
  $region25: #{llama_attention_forward.4} parent=0 // pred_fallthru
    _
  // Predicated region
  $region26: #{llama_attention_forward.4} parent=0 // pred_check
    _
  $region27: #{llama_attention_forward.4} parent=0 // pred_check_branch
    %1203 = sbr.rel (0) target = $region29
  $region28: #{llama_attention_forward.4} parent=0 // pred_region
    _
  $region29: #{llama_attention_forward.4} parent=0 // pred_fallthru
    _
  // Predicated region
  $region30: #{llama_attention_forward.4} parent=0 // pred_check
    _
  $region31: #{llama_attention_forward.4} parent=0 // pred_check_branch
    %1205 = sbr.rel (0) target = $region33
  $region32: #{llama_attention_forward.4} parent=0 // pred_region
    _
  $region33: #{llama_attention_forward.4} parent=0 // pred_fallthru
    _

</llo_original>
